<compile_context>
chip_gen: v5e
topology: v5e:2x2
jax: 0.10.0
libtpu: 0.0.40
codegen_flags: <defaults>
</compile_context>

<pallas_src>
import functools
import math

import jax
import jax.numpy as jnp
import numpy as np
from jax.experimental import pallas as pl
from jax.experimental.pallas import tpu as pltpu


# ------------------------------------------------------------------------------
# In-kernel helpers (traced inside the Pallas kernel)
# ------------------------------------------------------------------------------
def _shift_fwd(a, s, lanes):
    """out[:, p] = a[:, p + s] (static s >= 0); wraps only into discarded lanes."""
    if s == 0:
        return a
    return pltpu.roll(a, lanes - s, axis=1)


def _shift_bwd(a, s):
    """out[:, p] = a[:, p - s] (static s >= 0)."""
    if s == 0:
        return a
    return pltpu.roll(a, s, axis=1)


def _lrelu(t):
    # leaky_relu(t, 0.2) as one vmul + vmax (no compare/select).
    return jnp.maximum(t, 0.2 * t)


# ------------------------------------------------------------------------------
# The single fused kernel: one grid step == one batch element.
# ------------------------------------------------------------------------------
def _dec_style_block_kernel(
    style_ref, z0_ref, skip_ref, imgup_ref, masks_ref,
    affw_ref, affb_ref, affg_ref,
    w0_ref, wsq0_ref, b0_ref,
    w1_ref, wsq1_ref, b1_ref,
    wr_ref, br_ref,
    x_out_ref, img_out_ref,
    *, gw, lanes, fc_gain, cin, cout):
  f32 = jnp.float32
  sqrt2 = math.sqrt(2.0)

  style_col = style_ref[0]          # (S, 1)
  z0 = z0_ref[0]                    # (Cin,  L) zero-dilated conv0 input (pad 2), 19x19 grid
  skip = skip_ref[0]                # (Cout, L) skip embedded at top-left 16x16 of the grid
  imgup = imgup_ref[0]              # (Cimg, L) zero-dilated img (pad [2,1]) on the grid
  m_y0 = masks_ref[0:1, :]          # (1, L) interior rows/cols 1..2H+1 (conv0-out pad ring)
  m_x1 = masks_ref[1:2, :]          # (1, L) interior rows/cols 1..2H   (conv1-in  pad ring)

  # All three FullyConnected affines in ONE small MXU matmul, then split.
  # aff = (W @ style * (1/sqrt(S)) + b) * modconv_weight_gain, in column form.
  aff_all = (jnp.dot(affw_ref[...], style_col, preferred_element_type=f32)
             * fc_gain + affb_ref[...]) * affg_ref[...]      # (Cin+2*Cout, 1)
  aff0 = aff_all[0:cin]                                      # (Cin,  1)
  aff1 = aff_all[cin:cin + cout]                             # (Cout, 1)
  affr = aff_all[cin + cout:cin + 2 * cout]                  # (Cout, 1)

  def conv3x3(act, w_flat_ref):
    # act: modulated, zero-padded activation on the gw-grid, shape (Ci, L).
    # Patches are built in-register with 9 lane rolls (im2col fused, never in HBM),
    # then one MXU matmul (Co, 9*Ci) @ (9*Ci, L).
    pats = jnp.concatenate(
        [_shift_fwd(act, a * gw + b, lanes) for a in range(3) for b in range(3)],
        axis=0)
    return jnp.dot(w_flat_ref[...], pats, preferred_element_type=f32)

  def fir4(a):
    # Separable [1,3,3,1]/4 x [1,3,3,1]/4 filter == upfirdn2d 4x4 kernel with gain 4.
    t0, t1, t2, t3 = 0.25, 0.75, 0.75, 0.25
    h = (t0 * a + t1 * _shift_fwd(a, 1, lanes)
         + t2 * _shift_fwd(a, 2, lanes) + t3 * _shift_fwd(a, 3, lanes))
    return (t0 * h + t1 * _shift_fwd(h, gw, lanes)
            + t2 * _shift_fwd(h, 2 * gw, lanes) + t3 * _shift_fwd(h, 3 * gw, lanes))

  # ---------------- conv0: StyleConv 3x3 modulated conv, up=2 ----------------
  d0 = jax.lax.rsqrt(
      jnp.dot(wsq0_ref[...], aff0 * aff0, preferred_element_type=f32) + 1e-8)  # (Cout,1)
  y0 = conv3x3(z0 * aff0, w0_ref) * d0            # transposed conv; valid on rows/cols 0..2H
  y0p = _shift_bwd(y0, gw + 1) * m_y0             # re-embed with the 1-px zero pad ring
  t = fir4(y0p) + b0_ref[...]                     # upfirdn2d(pad=1, gain=4) + bias
  x1 = _lrelu(t) * sqrt2 + skip                   # lrelu * sqrt(2) + skip (valid 0..2H-1)

  # ---------------- conv1: StyleConv 3x3 modulated conv, up=1 ----------------
  d1 = jax.lax.rsqrt(
      jnp.dot(wsq1_ref[...], aff1 * aff1, preferred_element_type=f32) + 1e-8)
  x1p = _shift_bwd(x1, gw + 1) * m_x1             # zero-pad-by-1 embed of x1
  y1 = conv3x3(x1p * aff1, w1_ref) * d1
  x2 = _lrelu(y1 + b1_ref[...]) * sqrt2
  x_out_ref[...] = x2[None]

  # ---------------- toRGB: 1x1 modulated conv (no demod) + upsampled img -----
  rgb = jnp.dot(wr_ref[...], x2 * affr, preferred_element_type=f32) + br_ref[...]
  img_out_ref[...] = (fir4(imgup) + rgb)[None]


# ------------------------------------------------------------------------------
# Wrapper: host-side (tiny XLA) re-layout + one pallas_call.
# ------------------------------------------------------------------------------
def dec_style_block_forward(params, x, img, style, skip):
  B, Cin, H, W = x.shape
  assert H == W
  p0, p1, pr = params['conv0'], params['conv1'], params['torgb']
  Cout = p0['w'].shape[0]
  Cimg = pr['w'].shape[0]
  S = style.shape[1]
  GW = 2 * H + 3                               # 19: dilated + FIR-padded working grid
  L = ((GW * GW + 127) // 128) * 128           # 384 lanes (lane-dense rows & stores)
  Ctot = Cin + 2 * Cout

  def flat_w(w):                               # (Co,Ci,3,3) -> (Co, 9*Ci), tap-major
    co, ci = w.shape[:2]
    return jnp.transpose(w, (0, 2, 3, 1)).reshape(co, 9 * ci)

  def wsq(w):                                  # per (o,i) sum of squared spatial taps
    return jnp.sum(w * w, axis=(2, 3))

  def col(v):
    return v.reshape(-1, 1)

  def dilate2(a):                              # zero-upsample x2 with pad 2 each side
    return jax.lax.pad(a, jnp.array(0.0, jnp.float32),
                       [(0, 0, 0), (0, 0, 0), (2, 2, 1), (2, 2, 1)])

  def to_lanes(a):                             # (B,C,GW,GW) -> (B,C,L) zero-padded lanes
    b_, c_ = a.shape[:2]
    flat = a.reshape(b_, c_, GW * GW)
    return jnp.pad(flat, ((0, 0), (0, 0), (0, L - GW * GW)))

  z0 = to_lanes(dilate2(x))
  imgup = to_lanes(dilate2(img))
  skipg = to_lanes(jnp.pad(skip, ((0, 0), (0, 0), (0, GW - 2 * H), (0, GW - 2 * W))))
  style_col = style.reshape(B, S, 1)

  idx = np.arange(L)
  rr, cc = idx // GW, idx % GW
  m_y0 = (rr >= 1) & (rr <= 2 * H + 1) & (cc >= 1) & (cc <= 2 * W + 1)
  m_x1 = (rr >= 1) & (rr <= 2 * H) & (cc >= 1) & (cc <= 2 * W)
  masks = jnp.asarray(np.stack([m_y0, m_x1]).astype(np.float32))           # (2, L)

  # Fused affine parameters (all three FullyConnected layers share style_dim S).
  wg0 = 1.0 / math.sqrt(Cin * 9)
  wg1 = 1.0 / math.sqrt(Cout * 9)
  wgr = 1.0 / math.sqrt(Cout)
  aff_w_all = jnp.concatenate([p0['aff_w'], p1['aff_w'], pr['aff_w']], axis=0)   # (Ctot,S)
  aff_b_all = jnp.concatenate([col(p0['aff_b']), col(p1['aff_b']),
                               col(pr['aff_b'])], axis=0)                        # (Ctot,1)
  aff_g_all = jnp.asarray(np.concatenate(
      [np.full(Cin, wg0), np.full(Cout, wg1), np.full(Cout, wgr)]
  ).astype(np.float32).reshape(-1, 1))                                           # (Ctot,1)

  kern = functools.partial(
      _dec_style_block_kernel, gw=GW, lanes=L,
      fc_gain=1.0 / math.sqrt(S), cin=Cin, cout=Cout)

  def full(shape):
    return pl.BlockSpec(shape, lambda b: (0,) * len(shape))

  def per_b(c):
    return pl.BlockSpec((1, c, L), lambda b: (b, 0, 0))

  x2_full, img_full = pl.pallas_call(
      kern,
      out_shape=(jax.ShapeDtypeStruct((B, Cout, L), jnp.float32),
                 jax.ShapeDtypeStruct((B, Cimg, L), jnp.float32)),
      grid=(B,),
      in_specs=[
          pl.BlockSpec((1, S, 1), lambda b: (b, 0, 0)),   # style (column form)
          per_b(Cin),                                     # dilated conv0 input
          per_b(Cout),                                    # skip (embedded on grid)
          per_b(Cimg),                                    # dilated img for toRGB skip
          full((2, L)),                                   # pad-ring masks
          full((Ctot, S)), full((Ctot, 1)), full((Ctot, 1)),   # fused affines
          full((Cout, 9 * Cin)), full((Cout, Cin)), full((Cout, 1)),    # conv0
          full((Cout, 9 * Cout)), full((Cout, Cout)), full((Cout, 1)),  # conv1
          full((Cimg, Cout)), full((Cimg, 1)),                          # toRGB
      ],
      out_specs=(per_b(Cout), per_b(Cimg)),
      compiler_params=pltpu.CompilerParams(dimension_semantics=("parallel",)),
  )(style_col, z0, skipg, imgup, masks,
    aff_w_all, aff_b_all, aff_g_all,
    flat_w(p0['w']), wsq(p0['w']), col(p0['b']),
    flat_w(p1['w']), wsq(p1['w']), col(p1['b']),
    pr['w'][:, :, 0, 0], col(pr['b']))

  def from_lanes(a, c):
    return a[:, :, :GW * GW].reshape(B, c, GW, GW)[:, :, :2 * H, :2 * W]

  return from_lanes(x2_full, Cout), from_lanes(img_full, Cimg)


# ------------------------------------------------------------------------------
# Pure-JAX (non-Pallas) reference of the PyTorch forward, for a numerical check.
# ------------------------------------------------------------------------------
def _reference_forward(params, x, img, style, skip):
  B, Cin, H, W = x.shape
  p0, p1, pr = params['conv0'], params['conv1'], params['torgb']
  Cout = p0['w'].shape[0]
  S = style.shape[1]
  sqrt2 = math.sqrt(2.0)
  hi = jax.lax.Precision.HIGHEST
  f2 = np.outer([1., 3., 3., 1.], [1., 3., 3., 1.]).astype(np.float32)
  f2 = f2 / f2.sum() * 4.0                                  # setup_filter + gain up**2

  def affine(aw, ab):
    return style @ aw.T / math.sqrt(S) + ab                 # (B, C)

  def mod_weights(w, sty, demod):
    k = w.shape[-1]
    wg = 1.0 / math.sqrt(w.shape[1] * k * k)
    wm = w[None] * wg * sty[:, None, :, None, None]
    if demod:
      d = jax.lax.rsqrt(jnp.sum(wm * wm, axis=(2, 3, 4), keepdims=True) + 1e-8)
      wm = wm * d
    return wm                                               # (B, Co, Ci, k, k)

  def conv3x3_valid(xp, wm):
    co = wm.shape[1]
    ho, wo = xp.shape[2] - 2, xp.shape[3] - 2
    pats = jnp.stack([xp[:, :, a:a + ho, b:b + wo]
                      for a in range(3) for b in range(3)], axis=2)
    pats = pats.reshape(B, -1, ho * wo)                     # (B, Ci*9, P) i-major
    wf = wm.reshape(B, co, -1)                              # (B, Co, Ci*9) i-major
    out = jnp.einsum('bok,bkp->bop', wf, pats, precision=hi)
    return out.reshape(B, co, ho, wo)

  def dilate2(a):
    return jax.lax.pad(a, jnp.array(0.0, jnp.float32),
                       [(0, 0, 0), (0, 0, 0), (2, 2, 1), (2, 2, 1)])

  def pad1(a):
    return jnp.pad(a, ((0, 0), (0, 0), (1, 1), (1, 1)))

  def fir4(xp):
    ho, wo = xp.shape[2] - 3, xp.shape[3] - 3
    acc = jnp.zeros(xp.shape[:2] + (ho, wo), jnp.float32)
    for i in range(4):
      for j in range(4):
        acc = acc + float(f2[i, j]) * xp[:, :, i:i + ho, j:j + wo]
    return acc

  # conv0 (up=2) -> FIR -> bias/lrelu/sqrt2 -> +skip
  wm0 = mod_weights(p0['w'], affine(p0['aff_w'], p0['aff_b']), True)
  y0 = conv3x3_valid(dilate2(x), wm0)
  t = fir4(pad1(y0)) + p0['b'][None, :, None, None]
  x1 = jnp.where(t >= 0, t, 0.2 * t) * sqrt2 + skip
  # conv1 (up=1)
  wm1 = mod_weights(p1['w'], affine(p1['aff_w'], p1['aff_b']), True)
  t = conv3x3_valid(pad1(x1), wm1) + p1['b'][None, :, None, None]
  x2 = jnp.where(t >= 0, t, 0.2 * t) * sqrt2
  # toRGB + upsampled img skip
  wmr = mod_weights(pr['w'], affine(pr['aff_w'], pr['aff_b']), False)
  rgb = jnp.einsum('boi,bihw->bohw', wmr[..., 0, 0], x2,
                   precision=hi) + pr['b'][None, :, None, None]
  img_out = rgb + fir4(dilate2(img))
  return x2, img_out


# ------------------------------------------------------------------------------
# Main
# ------------------------------------------------------------------------------
if __name__ == "__main__":
  B, Cin, Cout, S, Cimg, H, W = 2, 8, 8, 16, 3, 8, 8

  key = jax.random.PRNGKey(0)
  ks = jax.random.split(key, 13)
  params = {
      'conv0': dict(w=jax.random.normal(ks[0], (Cout, Cin, 3, 3), jnp.float32),
                    b=0.1 * jax.random.normal(ks[1], (Cout,), jnp.float32),
                    aff_w=jax.random.normal(ks[2], (Cin, S), jnp.float32),
                    aff_b=jnp.ones((Cin,), jnp.float32)),
      'conv1': dict(w=jax.random.normal(ks[3], (Cout, Cout, 3, 3), jnp.float32),
                    b=0.1 * jax.random.normal(ks[4], (Cout,), jnp.float32),
                    aff_w=jax.random.normal(ks[5], (Cout, S), jnp.float32),
                    aff_b=jnp.ones((Cout,), jnp.float32)),
      'torgb': dict(w=jax.random.normal(ks[6], (Cimg, Cout, 1, 1), jnp.float32),
                    b=0.1 * jax.random.normal(ks[7], (Cimg,), jnp.float32),
                    aff_w=jax.random.normal(ks[8], (Cout, S), jnp.float32),
                    aff_b=jnp.ones((Cout,), jnp.float32)),
  }
  x = jax.random.normal(ks[9], (B, Cin, H, W), jnp.float32)
  style = jax.random.normal(ks[10], (B, S), jnp.float32)
  skip = jax.random.normal(ks[11], (B, Cout, 2 * H, 2 * W), jnp.float32)
  img = jax.random.normal(ks[12], (B, Cimg, H, W), jnp.float32)

  fwd = jax.jit(dec_style_block_forward)
  x_out, img_out = fwd(params, x, img, style, skip)
  x_out = jax.block_until_ready(x_out)
  img_out = jax.block_until_ready(img_out)

  assert x_out.shape == (B, Cout, 2 * H, 2 * W)
  assert img_out.shape == (B, Cimg, 2 * H, 2 * W)
  assert bool(jnp.all(jnp.isfinite(x_out))) and bool(jnp.all(jnp.isfinite(img_out)))

  # Numerical check against the pure-JAX reference of the PyTorch forward.
  x_ref, img_ref = jax.jit(_reference_forward)(params, x, img, style, skip)
  def rel_err(a, b):
    return float(jnp.max(jnp.abs(a - b)) / (jnp.max(jnp.abs(b)) + 1e-6))
  ex, ei = rel_err(x_out, x_ref), rel_err(img_out, img_ref)
  assert ex < 8e-2 and ei < 8e-2, (ex, ei)

  print("KERNEL_OK")
</pallas_src>

<mosaic_0001>
module attributes {stable_mosaic.version = 11 : i64} {
  func.func @_dec_style_block_kernel(%arg0: i32, %arg1: memref<1x16x1xf32, #tpu.memory_space<vmem>>, %arg2: memref<1x8x384xf32, #tpu.memory_space<vmem>>, %arg3: memref<1x8x384xf32, #tpu.memory_space<vmem>>, %arg4: memref<1x3x384xf32, #tpu.memory_space<vmem>>, %arg5: memref<2x384xf32, #tpu.memory_space<vmem>>, %arg6: memref<24x16xf32, #tpu.memory_space<vmem>>, %arg7: memref<24x1xf32, #tpu.memory_space<vmem>>, %arg8: memref<24x1xf32, #tpu.memory_space<vmem>>, %arg9: memref<8x72xf32, #tpu.memory_space<vmem>>, %arg10: memref<8x8xf32, #tpu.memory_space<vmem>>, %arg11: memref<8x1xf32, #tpu.memory_space<vmem>>, %arg12: memref<8x72xf32, #tpu.memory_space<vmem>>, %arg13: memref<8x8xf32, #tpu.memory_space<vmem>>, %arg14: memref<8x1xf32, #tpu.memory_space<vmem>>, %arg15: memref<3x8xf32, #tpu.memory_space<vmem>>, %arg16: memref<3x1xf32, #tpu.memory_space<vmem>>, %arg17: memref<1x8x384xf32, #tpu.memory_space<vmem>>, %arg18: memref<1x3x384xf32, #tpu.memory_space<vmem>>) attributes {dimension_semantics = [#tpu.dimension_semantics<parallel>], iteration_bounds = array<i64: 2>, scalar_prefetch = 0 : i64, scratch_operands = 0 : i64, tpu.core_type = #tpu.core_type<tc>, window_params = [{transform_indices = @transform_0, window_bounds = array<i64: 1, 16, 1>}, {transform_indices = @transform_1, window_bounds = array<i64: 1, 8, 384>}, {transform_indices = @transform_2, window_bounds = array<i64: 1, 8, 384>}, {transform_indices = @transform_3, window_bounds = array<i64: 1, 3, 384>}, {pipeline_mode = #tpu.pipeline_mode<synchronous>, transform_indices = @transform_4, window_bounds = array<i64: 2, 384>}, {pipeline_mode = #tpu.pipeline_mode<synchronous>, transform_indices = @transform_5, window_bounds = array<i64: 24, 16>}, {pipeline_mode = #tpu.pipeline_mode<synchronous>, transform_indices = @transform_6, window_bounds = array<i64: 24, 1>}, {pipeline_mode = #tpu.pipeline_mode<synchronous>, transform_indices = @transform_7, window_bounds = array<i64: 24, 1>}, {pipeline_mode = #tpu.pipeline_mode<synchronous>, transform_indices = @transform_8, window_bounds = array<i64: 8, 72>}, {pipeline_mode = #tpu.pipeline_mode<synchronous>, transform_indices = @transform_9, window_bounds = array<i64: 8, 8>}, {pipeline_mode = #tpu.pipeline_mode<synchronous>, transform_indices = @transform_10, window_bounds = array<i64: 8, 1>}, {pipeline_mode = #tpu.pipeline_mode<synchronous>, transform_indices = @transform_11, window_bounds = array<i64: 8, 72>}, {pipeline_mode = #tpu.pipeline_mode<synchronous>, transform_indices = @transform_12, window_bounds = array<i64: 8, 8>}, {pipeline_mode = #tpu.pipeline_mode<synchronous>, transform_indices = @transform_13, window_bounds = array<i64: 8, 1>}, {pipeline_mode = #tpu.pipeline_mode<synchronous>, transform_indices = @transform_14, window_bounds = array<i64: 3, 8>}, {pipeline_mode = #tpu.pipeline_mode<synchronous>, transform_indices = @transform_15, window_bounds = array<i64: 3, 1>}, {transform_indices = @transform_16, window_bounds = array<i64: 1, 8, 384>}, {transform_indices = @transform_17, window_bounds = array<i64: 1, 3, 384>}]} {
    %c0 = arith.constant 0 : index
    %c0_0 = arith.constant 0 : index
    %c0_1 = arith.constant 0 : index
    %0 = vector.load %arg1[%c0, %c0_0, %c0_1] : memref<1x16x1xf32, #tpu.memory_space<vmem>>, vector<1x16x1xf32>
    %1 = vector.shape_cast %0 : vector<1x16x1xf32> to vector<16x1xf32>
    %c0_2 = arith.constant 0 : index
    %c0_3 = arith.constant 0 : index
    %c0_4 = arith.constant 0 : index
    %2 = vector.load %arg2[%c0_2, %c0_3, %c0_4] : memref<1x8x384xf32, #tpu.memory_space<vmem>>, vector<1x8x384xf32>
    %3 = vector.shape_cast %2 : vector<1x8x384xf32> to vector<8x384xf32>
    %c0_5 = arith.constant 0 : index
    %c0_6 = arith.constant 0 : index
    %c0_7 = arith.constant 0 : index
    %4 = vector.load %arg3[%c0_5, %c0_6, %c0_7] : memref<1x8x384xf32, #tpu.memory_space<vmem>>, vector<1x8x384xf32>
    %5 = vector.shape_cast %4 : vector<1x8x384xf32> to vector<8x384xf32>
    %c0_8 = arith.constant 0 : index
    %c0_9 = arith.constant 0 : index
    %c0_10 = arith.constant 0 : index
    %6 = vector.load %arg4[%c0_8, %c0_9, %c0_10] : memref<1x3x384xf32, #tpu.memory_space<vmem>>, vector<1x3x384xf32>
    %7 = vector.shape_cast %6 : vector<1x3x384xf32> to vector<3x384xf32>
    %c0_11 = arith.constant 0 : index
    %c0_12 = arith.constant 0 : index
    %8 = vector.load %arg5[%c0_11, %c0_12] : memref<2x384xf32, #tpu.memory_space<vmem>>, vector<1x384xf32>
    %c1 = arith.constant 1 : index
    %c0_13 = arith.constant 0 : index
    %9 = vector.load %arg5[%c1, %c0_13] : memref<2x384xf32, #tpu.memory_space<vmem>>, vector<1x384xf32>
    %c0_14 = arith.constant 0 : index
    %c0_15 = arith.constant 0 : index
    %10 = vector.load %arg6[%c0_14, %c0_15] : memref<24x16xf32, #tpu.memory_space<vmem>>, vector<24x16xf32>
    %cst = arith.constant dense<0.000000e+00> : vector<24x1xf32>
    %11 = tpu.matmul %10, %1, %cst {dimension_numbers = #tpu.dot_dimension_numbers<[1], [0], [0], [1], [0, 0, 1, 1], [], []>} : vector<24x16xf32>, vector<16x1xf32>, vector<24x1xf32> -> vector<24x1xf32>
    %cst_16 = arith.constant 2.500000e-01 : f32
    %12 = vector.broadcast %cst_16 : f32 to vector<24x1xf32>
    %13 = arith.mulf %11, %12 : vector<24x1xf32>
    %c0_17 = arith.constant 0 : index
    %c0_18 = arith.constant 0 : index
    %14 = vector.load %arg7[%c0_17, %c0_18] : memref<24x1xf32, #tpu.memory_space<vmem>>, vector<24x1xf32>
    %15 = arith.addf %13, %14 : vector<24x1xf32>
    %c0_19 = arith.constant 0 : index
    %c0_20 = arith.constant 0 : index
    %16 = vector.load %arg8[%c0_19, %c0_20] : memref<24x1xf32, #tpu.memory_space<vmem>>, vector<24x1xf32>
    %17 = arith.mulf %15, %16 : vector<24x1xf32>
    %18 = vector.extract_strided_slice %17 {offsets = [0, 0], sizes = [8, 1], strides = [1, 1]} : vector<24x1xf32> to vector<8x1xf32>
    %19 = vector.extract_strided_slice %17 {offsets = [8, 0], sizes = [8, 1], strides = [1, 1]} : vector<24x1xf32> to vector<8x1xf32>
    %20 = vector.extract_strided_slice %17 {offsets = [16, 0], sizes = [8, 1], strides = [1, 1]} : vector<24x1xf32> to vector<8x1xf32>
    %c0_21 = arith.constant 0 : index
    %c0_22 = arith.constant 0 : index
    %21 = vector.load %arg10[%c0_21, %c0_22] : memref<8x8xf32, #tpu.memory_space<vmem>>, vector<8x8xf32>
    %22 = arith.mulf %18, %18 : vector<8x1xf32>
    %cst_23 = arith.constant dense<0.000000e+00> : vector<8x1xf32>
    %23 = tpu.matmul %21, %22, %cst_23 {dimension_numbers = #tpu.dot_dimension_numbers<[1], [0], [0], [1], [0, 0, 1, 1], [], []>} : vector<8x8xf32>, vector<8x1xf32>, vector<8x1xf32> -> vector<8x1xf32>
    %cst_24 = arith.constant 9.99999993E-9 : f32
    %24 = vector.broadcast %cst_24 : f32 to vector<8x1xf32>
    %25 = arith.addf %23, %24 : vector<8x1xf32>
    %26 = math.rsqrt %25 : vector<8x1xf32>
    %27 = vector.broadcast %18 : vector<8x1xf32> to vector<8x384xf32>
    %28 = arith.mulf %3, %27 : vector<8x384xf32>
    %c383_i32 = arith.constant 383 : i32
    %29 = tpu.dynamic_rotate %28 by %c383_i32 dim 1 : vector<8x384xf32>, i32 -> vector<8x384xf32>
    %c382_i32 = arith.constant 382 : i32
    %30 = tpu.dynamic_rotate %28 by %c382_i32 dim 1 : vector<8x384xf32>, i32 -> vector<8x384xf32>
    %c365_i32 = arith.constant 365 : i32
    %31 = tpu.dynamic_rotate %28 by %c365_i32 dim 1 : vector<8x384xf32>, i32 -> vector<8x384xf32>
    %c364_i32 = arith.constant 364 : i32
    %32 = tpu.dynamic_rotate %28 by %c364_i32 dim 1 : vector<8x384xf32>, i32 -> vector<8x384xf32>
    %c363_i32 = arith.constant 363 : i32
    %33 = tpu.dynamic_rotate %28 by %c363_i32 dim 1 : vector<8x384xf32>, i32 -> vector<8x384xf32>
    %c346_i32 = arith.constant 346 : i32
    %34 = tpu.dynamic_rotate %28 by %c346_i32 dim 1 : vector<8x384xf32>, i32 -> vector<8x384xf32>
    %c345_i32 = arith.constant 345 : i32
    %35 = tpu.dynamic_rotate %28 by %c345_i32 dim 1 : vector<8x384xf32>, i32 -> vector<8x384xf32>
    %c344_i32 = arith.constant 344 : i32
    %36 = tpu.dynamic_rotate %28 by %c344_i32 dim 1 : vector<8x384xf32>, i32 -> vector<8x384xf32>
    %37 = tpu.concatenate %28, %29, %30, %31, %32, %33, %34, %35, %36 in 0 : vector<8x384xf32>, vector<8x384xf32>, vector<8x384xf32>, vector<8x384xf32>, vector<8x384xf32>, vector<8x384xf32>, vector<8x384xf32>, vector<8x384xf32>, vector<8x384xf32> -> vector<72x384xf32>
    %c0_25 = arith.constant 0 : index
    %c0_26 = arith.constant 0 : index
    %38 = vector.load %arg9[%c0_25, %c0_26] : memref<8x72xf32, #tpu.memory_space<vmem>>, vector<8x72xf32>
    %cst_27 = arith.constant dense<0.000000e+00> : vector<8x384xf32>
    %39 = tpu.matmul %38, %37, %cst_27 {dimension_numbers = #tpu.dot_dimension_numbers<[1], [0], [0], [1], [0, 0, 1, 1], [], []>} : vector<8x72xf32>, vector<72x384xf32>, vector<8x384xf32> -> vector<8x384xf32>
    %40 = vector.broadcast %26 : vector<8x1xf32> to vector<8x384xf32>
    %41 = arith.mulf %39, %40 : vector<8x384xf32>
    %c20_i32 = arith.constant 20 : i32
    %42 = tpu.dynamic_rotate %41 by %c20_i32 dim 1 : vector<8x384xf32>, i32 -> vector<8x384xf32>
    %43 = vector.broadcast %8 : vector<1x384xf32> to vector<8x384xf32>
    %44 = arith.mulf %42, %43 : vector<8x384xf32>
    %cst_28 = arith.constant 2.500000e-01 : f32
    %45 = vector.broadcast %cst_28 : f32 to vector<8x384xf32>
    %46 = arith.mulf %45, %44 : vector<8x384xf32>
    %c383_i32_29 = arith.constant 383 : i32
    %47 = tpu.dynamic_rotate %44 by %c383_i32_29 dim 1 : vector<8x384xf32>, i32 -> vector<8x384xf32>
    %cst_30 = arith.constant 7.500000e-01 : f32
    %48 = vector.broadcast %cst_30 : f32 to vector<8x384xf32>
    %49 = arith.mulf %48, %47 : vector<8x384xf32>
    %50 = arith.addf %46, %49 : vector<8x384xf32>
    %c382_i32_31 = arith.constant 382 : i32
    %51 = tpu.dynamic_rotate %44 by %c382_i32_31 dim 1 : vector<8x384xf32>, i32 -> vector<8x384xf32>
    %cst_32 = arith.constant 7.500000e-01 : f32
    %52 = vector.broadcast %cst_32 : f32 to vector<8x384xf32>
    %53 = arith.mulf %52, %51 : vector<8x384xf32>
    %54 = arith.addf %50, %53 : vector<8x384xf32>
    %c381_i32 = arith.constant 381 : i32
    %55 = tpu.dynamic_rotate %44 by %c381_i32 dim 1 : vector<8x384xf32>, i32 -> vector<8x384xf32>
    %cst_33 = arith.constant 2.500000e-01 : f32
    %56 = vector.broadcast %cst_33 : f32 to vector<8x384xf32>
    %57 = arith.mulf %56, %55 : vector<8x384xf32>
    %58 = arith.addf %54, %57 : vector<8x384xf32>
    %cst_34 = arith.constant 2.500000e-01 : f32
    %59 = vector.broadcast %cst_34 : f32 to vector<8x384xf32>
    %60 = arith.mulf %59, %58 : vector<8x384xf32>
    %c365_i32_35 = arith.constant 365 : i32
    %61 = tpu.dynamic_rotate %58 by %c365_i32_35 dim 1 : vector<8x384xf32>, i32 -> vector<8x384xf32>
    %cst_36 = arith.constant 7.500000e-01 : f32
    %62 = vector.broadcast %cst_36 : f32 to vector<8x384xf32>
    %63 = arith.mulf %62, %61 : vector<8x384xf32>
    %64 = arith.addf %60, %63 : vector<8x384xf32>
    %c346_i32_37 = arith.constant 346 : i32
    %65 = tpu.dynamic_rotate %58 by %c346_i32_37 dim 1 : vector<8x384xf32>, i32 -> vector<8x384xf32>
    %cst_38 = arith.constant 7.500000e-01 : f32
    %66 = vector.broadcast %cst_38 : f32 to vector<8x384xf32>
    %67 = arith.mulf %66, %65 : vector<8x384xf32>
    %68 = arith.addf %64, %67 : vector<8x384xf32>
    %c327_i32 = arith.constant 327 : i32
    %69 = tpu.dynamic_rotate %58 by %c327_i32 dim 1 : vector<8x384xf32>, i32 -> vector<8x384xf32>
    %cst_39 = arith.constant 2.500000e-01 : f32
    %70 = vector.broadcast %cst_39 : f32 to vector<8x384xf32>
    %71 = arith.mulf %70, %69 : vector<8x384xf32>
    %72 = arith.addf %68, %71 : vector<8x384xf32>
    %c0_40 = arith.constant 0 : index
    %c0_41 = arith.constant 0 : index
    %73 = vector.load %arg11[%c0_40, %c0_41] : memref<8x1xf32, #tpu.memory_space<vmem>>, vector<8x1xf32>
    %74 = vector.broadcast %73 : vector<8x1xf32> to vector<8x384xf32>
    %75 = arith.addf %72, %74 : vector<8x384xf32>
    %cst_42 = arith.constant 2.000000e-01 : f32
    %76 = vector.broadcast %cst_42 : f32 to vector<8x384xf32>
    %77 = arith.mulf %76, %75 : vector<8x384xf32>
    %78 = arith.maximumf %75, %77 : vector<8x384xf32>
    %cst_43 = arith.constant 1.41421354 : f32
    %79 = vector.broadcast %cst_43 : f32 to vector<8x384xf32>
    %80 = arith.mulf %78, %79 : vector<8x384xf32>
    %81 = arith.addf %80, %5 : vector<8x384xf32>
    %c0_44 = arith.constant 0 : index
    %c0_45 = arith.constant 0 : index
    %82 = vector.load %arg13[%c0_44, %c0_45] : memref<8x8xf32, #tpu.memory_space<vmem>>, vector<8x8xf32>
    %83 = arith.mulf %19, %19 : vector<8x1xf32>
    %cst_46 = arith.constant dense<0.000000e+00> : vector<8x1xf32>
    %84 = tpu.matmul %82, %83, %cst_46 {dimension_numbers = #tpu.dot_dimension_numbers<[1], [0], [0], [1], [0, 0, 1, 1], [], []>} : vector<8x8xf32>, vector<8x1xf32>, vector<8x1xf32> -> vector<8x1xf32>
    %cst_47 = arith.constant 9.99999993E-9 : f32
    %85 = vector.broadcast %cst_47 : f32 to vector<8x1xf32>
    %86 = arith.addf %84, %85 : vector<8x1xf32>
    %87 = math.rsqrt %86 : vector<8x1xf32>
    %c20_i32_48 = arith.constant 20 : i32
    %88 = tpu.dynamic_rotate %81 by %c20_i32_48 dim 1 : vector<8x384xf32>, i32 -> vector<8x384xf32>
    %89 = vector.broadcast %9 : vector<1x384xf32> to vector<8x384xf32>
    %90 = arith.mulf %88, %89 : vector<8x384xf32>
    %91 = vector.broadcast %19 : vector<8x1xf32> to vector<8x384xf32>
    %92 = arith.mulf %90, %91 : vector<8x384xf32>
    %c383_i32_49 = arith.constant 383 : i32
    %93 = tpu.dynamic_rotate %92 by %c383_i32_49 dim 1 : vector<8x384xf32>, i32 -> vector<8x384xf32>
    %c382_i32_50 = arith.constant 382 : i32
    %94 = tpu.dynamic_rotate %92 by %c382_i32_50 dim 1 : vector<8x384xf32>, i32 -> vector<8x384xf32>
    %c365_i32_51 = arith.constant 365 : i32
    %95 = tpu.dynamic_rotate %92 by %c365_i32_51 dim 1 : vector<8x384xf32>, i32 -> vector<8x384xf32>
    %c364_i32_52 = arith.constant 364 : i32
    %96 = tpu.dynamic_rotate %92 by %c364_i32_52 dim 1 : vector<8x384xf32>, i32 -> vector<8x384xf32>
    %c363_i32_53 = arith.constant 363 : i32
    %97 = tpu.dynamic_rotate %92 by %c363_i32_53 dim 1 : vector<8x384xf32>, i32 -> vector<8x384xf32>
    %c346_i32_54 = arith.constant 346 : i32
    %98 = tpu.dynamic_rotate %92 by %c346_i32_54 dim 1 : vector<8x384xf32>, i32 -> vector<8x384xf32>
    %c345_i32_55 = arith.constant 345 : i32
    %99 = tpu.dynamic_rotate %92 by %c345_i32_55 dim 1 : vector<8x384xf32>, i32 -> vector<8x384xf32>
    %c344_i32_56 = arith.constant 344 : i32
    %100 = tpu.dynamic_rotate %92 by %c344_i32_56 dim 1 : vector<8x384xf32>, i32 -> vector<8x384xf32>
    %101 = tpu.concatenate %92, %93, %94, %95, %96, %97, %98, %99, %100 in 0 : vector<8x384xf32>, vector<8x384xf32>, vector<8x384xf32>, vector<8x384xf32>, vector<8x384xf32>, vector<8x384xf32>, vector<8x384xf32>, vector<8x384xf32>, vector<8x384xf32> -> vector<72x384xf32>
    %c0_57 = arith.constant 0 : index
    %c0_58 = arith.constant 0 : index
    %102 = vector.load %arg12[%c0_57, %c0_58] : memref<8x72xf32, #tpu.memory_space<vmem>>, vector<8x72xf32>
    %cst_59 = arith.constant dense<0.000000e+00> : vector<8x384xf32>
    %103 = tpu.matmul %102, %101, %cst_59 {dimension_numbers = #tpu.dot_dimension_numbers<[1], [0], [0], [1], [0, 0, 1, 1], [], []>} : vector<8x72xf32>, vector<72x384xf32>, vector<8x384xf32> -> vector<8x384xf32>
    %104 = vector.broadcast %87 : vector<8x1xf32> to vector<8x384xf32>
    %105 = arith.mulf %103, %104 : vector<8x384xf32>
    %c0_60 = arith.constant 0 : index
    %c0_61 = arith.constant 0 : index
    %106 = vector.load %arg14[%c0_60, %c0_61] : memref<8x1xf32, #tpu.memory_space<vmem>>, vector<8x1xf32>
    %107 = vector.broadcast %106 : vector<8x1xf32> to vector<8x384xf32>
    %108 = arith.addf %105, %107 : vector<8x384xf32>
    %cst_62 = arith.constant 2.000000e-01 : f32
    %109 = vector.broadcast %cst_62 : f32 to vector<8x384xf32>
    %110 = arith.mulf %109, %108 : vector<8x384xf32>
    %111 = arith.maximumf %108, %110 : vector<8x384xf32>
    %cst_63 = arith.constant 1.41421354 : f32
    %112 = vector.broadcast %cst_63 : f32 to vector<8x384xf32>
    %113 = arith.mulf %111, %112 : vector<8x384xf32>
    %114 = vector.shape_cast %113 : vector<8x384xf32> to vector<1x8x384xf32>
    %c0_64 = arith.constant 0 : index
    %c0_65 = arith.constant 0 : index
    %c0_66 = arith.constant 0 : index
    %115 = vector.load %arg17[%c0_64, %c0_65, %c0_66] : memref<1x8x384xf32, #tpu.memory_space<vmem>>, vector<1x8x384xf32>
    tpu.vector_store %arg17[%c0_64, %c0_65, %c0_66], %114 {strides = array<i32>} : memref<1x8x384xf32, #tpu.memory_space<vmem>>, vector<1x8x384xf32>,
    %c0_67 = arith.constant 0 : index
    %c0_68 = arith.constant 0 : index
    %116 = vector.load %arg15[%c0_67, %c0_68] : memref<3x8xf32, #tpu.memory_space<vmem>>, vector<3x8xf32>
    %117 = vector.broadcast %20 : vector<8x1xf32> to vector<8x384xf32>
    %118 = arith.mulf %113, %117 : vector<8x384xf32>
    %cst_69 = arith.constant dense<0.000000e+00> : vector<3x384xf32>
    %119 = tpu.matmul %116, %118, %cst_69 {dimension_numbers = #tpu.dot_dimension_numbers<[1], [0], [0], [1], [0, 0, 1, 1], [], []>} : vector<3x8xf32>, vector<8x384xf32>, vector<3x384xf32> -> vector<3x384xf32>
    %c0_70 = arith.constant 0 : index
    %c0_71 = arith.constant 0 : index
    %120 = vector.load %arg16[%c0_70, %c0_71] : memref<3x1xf32, #tpu.memory_space<vmem>>, vector<3x1xf32>
    %121 = vector.broadcast %120 : vector<3x1xf32> to vector<3x384xf32>
    %122 = arith.addf %119, %121 : vector<3x384xf32>
    %cst_72 = arith.constant 2.500000e-01 : f32
    %123 = vector.broadcast %cst_72 : f32 to vector<3x384xf32>
    %124 = arith.mulf %123, %7 : vector<3x384xf32>
    %c383_i32_73 = arith.constant 383 : i32
    %125 = tpu.dynamic_rotate %7 by %c383_i32_73 dim 1 : vector<3x384xf32>, i32 -> vector<3x384xf32>
    %cst_74 = arith.constant 7.500000e-01 : f32
    %126 = vector.broadcast %cst_74 : f32 to vector<3x384xf32>
    %127 = arith.mulf %126, %125 : vector<3x384xf32>
    %128 = arith.addf %124, %127 : vector<3x384xf32>
    %c382_i32_75 = arith.constant 382 : i32
    %129 = tpu.dynamic_rotate %7 by %c382_i32_75 dim 1 : vector<3x384xf32>, i32 -> vector<3x384xf32>
    %cst_76 = arith.constant 7.500000e-01 : f32
    %130 = vector.broadcast %cst_76 : f32 to vector<3x384xf32>
    %131 = arith.mulf %130, %129 : vector<3x384xf32>
    %132 = arith.addf %128, %131 : vector<3x384xf32>
    %c381_i32_77 = arith.constant 381 : i32
    %133 = tpu.dynamic_rotate %7 by %c381_i32_77 dim 1 : vector<3x384xf32>, i32 -> vector<3x384xf32>
    %cst_78 = arith.constant 2.500000e-01 : f32
    %134 = vector.broadcast %cst_78 : f32 to vector<3x384xf32>
    %135 = arith.mulf %134, %133 : vector<3x384xf32>
    %136 = arith.addf %132, %135 : vector<3x384xf32>
    %cst_79 = arith.constant 2.500000e-01 : f32
    %137 = vector.broadcast %cst_79 : f32 to vector<3x384xf32>
    %138 = arith.mulf %137, %136 : vector<3x384xf32>
    %c365_i32_80 = arith.constant 365 : i32
    %139 = tpu.dynamic_rotate %136 by %c365_i32_80 dim 1 : vector<3x384xf32>, i32 -> vector<3x384xf32>
    %cst_81 = arith.constant 7.500000e-01 : f32
    %140 = vector.broadcast %cst_81 : f32 to vector<3x384xf32>
    %141 = arith.mulf %140, %139 : vector<3x384xf32>
    %142 = arith.addf %138, %141 : vector<3x384xf32>
    %c346_i32_82 = arith.constant 346 : i32
    %143 = tpu.dynamic_rotate %136 by %c346_i32_82 dim 1 : vector<3x384xf32>, i32 -> vector<3x384xf32>
    %cst_83 = arith.constant 7.500000e-01 : f32
    %144 = vector.broadcast %cst_83 : f32 to vector<3x384xf32>
    %145 = arith.mulf %144, %143 : vector<3x384xf32>
    %146 = arith.addf %142, %145 : vector<3x384xf32>
    %c327_i32_84 = arith.constant 327 : i32
    %147 = tpu.dynamic_rotate %136 by %c327_i32_84 dim 1 : vector<3x384xf32>, i32 -> vector<3x384xf32>
    %cst_85 = arith.constant 2.500000e-01 : f32
    %148 = vector.broadcast %cst_85 : f32 to vector<3x384xf32>
    %149 = arith.mulf %148, %147 : vector<3x384xf32>
    %150 = arith.addf %146, %149 : vector<3x384xf32>
    %151 = arith.addf %150, %122 : vector<3x384xf32>
    %152 = vector.shape_cast %151 : vector<3x384xf32> to vector<1x3x384xf32>
    %c0_86 = arith.constant 0 : index
    %c0_87 = arith.constant 0 : index
    %c0_88 = arith.constant 0 : index
    %153 = vector.load %arg18[%c0_86, %c0_87, %c0_88] : memref<1x3x384xf32, #tpu.memory_space<vmem>>, vector<1x3x384xf32>
    tpu.vector_store %arg18[%c0_86, %c0_87, %c0_88], %152 {strides = array<i32>} : memref<1x3x384xf32, #tpu.memory_space<vmem>>, vector<1x3x384xf32>,
    return
  }
  func.func @transform_0(%arg0: i32) -> (i32, i32, i32) {
    %c0_i32 = arith.constant 0 : i32
    %c0_i32_0 = arith.constant 0 : i32
    %c0_i32_1 = arith.constant 0 : i32
    return %arg0, %c0_i32, %c0_i32_0 : i32, i32, i32
  }
  func.func @transform_1(%arg0: i32) -> (i32, i32, i32) {
    %c0_i32 = arith.constant 0 : i32
    %c0_i32_0 = arith.constant 0 : i32
    %c0_i32_1 = arith.constant 0 : i32
    return %arg0, %c0_i32, %c0_i32_0 : i32, i32, i32
  }
  func.func @transform_2(%arg0: i32) -> (i32, i32, i32) {
    %c0_i32 = arith.constant 0 : i32
    %c0_i32_0 = arith.constant 0 : i32
    %c0_i32_1 = arith.constant 0 : i32
    return %arg0, %c0_i32, %c0_i32_0 : i32, i32, i32
  }
  func.func @transform_3(%arg0: i32) -> (i32, i32, i32) {
    %c0_i32 = arith.constant 0 : i32
    %c0_i32_0 = arith.constant 0 : i32
    %c0_i32_1 = arith.constant 0 : i32
    return %arg0, %c0_i32, %c0_i32_0 : i32, i32, i32
  }
  func.func @transform_4(%arg0: i32) -> (i32, i32) {
    %c0_i32 = arith.constant 0 : i32
    %c0_i32_0 = arith.constant 0 : i32
    %c0_i32_1 = arith.constant 0 : i32
    return %c0_i32, %c0_i32_0 : i32, i32
  }
  func.func @transform_5(%arg0: i32) -> (i32, i32) {
    %c0_i32 = arith.constant 0 : i32
    %c0_i32_0 = arith.constant 0 : i32
    %c0_i32_1 = arith.constant 0 : i32
    return %c0_i32, %c0_i32_0 : i32, i32
  }
  func.func @transform_6(%arg0: i32) -> (i32, i32) {
    %c0_i32 = arith.constant 0 : i32
    %c0_i32_0 = arith.constant 0 : i32
    %c0_i32_1 = arith.constant 0 : i32
    return %c0_i32, %c0_i32_0 : i32, i32
  }
  func.func @transform_7(%arg0: i32) -> (i32, i32) {
    %c0_i32 = arith.constant 0 : i32
    %c0_i32_0 = arith.constant 0 : i32
    %c0_i32_1 = arith.constant 0 : i32
    return %c0_i32, %c0_i32_0 : i32, i32
  }
  func.func @transform_8(%arg0: i32) -> (i32, i32) {
    %c0_i32 = arith.constant 0 : i32
    %c0_i32_0 = arith.constant 0 : i32
    %c0_i32_1 = arith.constant 0 : i32
    return %c0_i32, %c0_i32_0 : i32, i32
  }
  func.func @transform_9(%arg0: i32) -> (i32, i32) {
    %c0_i32 = arith.constant 0 : i32
    %c0_i32_0 = arith.constant 0 : i32
    %c0_i32_1 = arith.constant 0 : i32
    return %c0_i32, %c0_i32_0 : i32, i32
  }
  func.func @transform_10(%arg0: i32) -> (i32, i32) {
    %c0_i32 = arith.constant 0 : i32
    %c0_i32_0 = arith.constant 0 : i32
    %c0_i32_1 = arith.constant 0 : i32
    return %c0_i32, %c0_i32_0 : i32, i32
  }
  func.func @transform_11(%arg0: i32) -> (i32, i32) {
    %c0_i32 = arith.constant 0 : i32
    %c0_i32_0 = arith.constant 0 : i32
    %c0_i32_1 = arith.constant 0 : i32
    return %c0_i32, %c0_i32_0 : i32, i32
  }
  func.func @transform_12(%arg0: i32) -> (i32, i32) {
    %c0_i32 = arith.constant 0 : i32
    %c0_i32_0 = arith.constant 0 : i32
    %c0_i32_1 = arith.constant 0 : i32
    return %c0_i32, %c0_i32_0 : i32, i32
  }
  func.func @transform_13(%arg0: i32) -> (i32, i32) {
    %c0_i32 = arith.constant 0 : i32
    %c0_i32_0 = arith.constant 0 : i32
    %c0_i32_1 = arith.constant 0 : i32
    return %c0_i32, %c0_i32_0 : i32, i32
  }
  func.func @transform_14(%arg0: i32) -> (i32, i32) {
    %c0_i32 = arith.constant 0 : i32
    %c0_i32_0 = arith.constant 0 : i32
    %c0_i32_1 = arith.constant 0 : i32
    return %c0_i32, %c0_i32_0 : i32, i32
  }
  func.func @transform_15(%arg0: i32) -> (i32, i32) {
    %c0_i32 = arith.constant 0 : i32
    %c0_i32_0 = arith.constant 0 : i32
    %c0_i32_1 = arith.constant 0 : i32
    return %c0_i32, %c0_i32_0 : i32, i32
  }
  func.func @transform_16(%arg0: i32) -> (i32, i32, i32) {
    %c0_i32 = arith.constant 0 : i32
    %c0_i32_0 = arith.constant 0 : i32
    %c0_i32_1 = arith.constant 0 : i32
    return %arg0, %c0_i32, %c0_i32_0 : i32, i32, i32
  }
  func.func @transform_17(%arg0: i32) -> (i32, i32, i32) {
    %c0_i32 = arith.constant 0 : i32
    %c0_i32_0 = arith.constant 0 : i32
    %c0_i32_1 = arith.constant 0 : i32
    return %arg0, %c0_i32, %c0_i32_0 : i32, i32, i32
  }
}

</mosaic_0001>

<llo_original>
// kernel: dec_style_block_forward.1
$region0: #{dec_style_block_forward.1}
  #allocation0 [shape = 'u32[]', space=smem, size = 0x4, offset = 0x4, fixed_abs, tag = 'smem constant byte address 0x4 - core index']
  #allocation1 [shape = 'u32[72,128]{1,0:T(1,128)}', space=vmem, size = 0x9000, scoped, tag = 'internal scratch']
  %s0 = inlined_call_operand.vmem [shape: f32[2,16,1], index: 0, kind: input, shape index: {}]
  %s1 = inlined_call_operand.vmem [shape: f32[2,8,384], index: 1, kind: input, shape index: {}]
  %s2 = inlined_call_operand.vmem [shape: f32[2,8,384], index: 2, kind: input, shape index: {}]
  %s3 = inlined_call_operand.vmem [shape: f32[2,3,384], index: 3, kind: input, shape index: {}]
  %s4 = inlined_call_operand.vmem [shape: f32[2,384], index: 4, kind: input, shape index: {}]
  %s5 = inlined_call_operand.vmem [shape: f32[24,16], index: 5, kind: input, shape index: {}]
  %s6 = inlined_call_operand.vmem [shape: f32[24,1], index: 6, kind: input, shape index: {}]
  %s7 = inlined_call_operand.vmem [shape: f32[24,1], index: 7, kind: input, shape index: {}]
  %s8 = inlined_call_operand.vmem [shape: f32[8,72], index: 8, kind: input, shape index: {}]
  %s9 = inlined_call_operand.vmem [shape: f32[8,8], index: 9, kind: input, shape index: {}]
  %s10 = inlined_call_operand.vmem [shape: f32[8,1], index: 10, kind: input, shape index: {}]
  %s11 = inlined_call_operand.vmem [shape: f32[8,72], index: 11, kind: input, shape index: {}]
  %s12 = inlined_call_operand.vmem [shape: f32[8,8], index: 12, kind: input, shape index: {}]
  %s13 = inlined_call_operand.vmem [shape: f32[8,1], index: 13, kind: input, shape index: {}]
  %s14 = inlined_call_operand.vmem [shape: f32[3,8], index: 14, kind: input, shape index: {}]
  %s15 = inlined_call_operand.vmem [shape: f32[3,1], index: 15, kind: input, shape index: {}]
  %s16 = inlined_call_operand.vmem [shape: f32[2,8,384], index: 16, kind: output, shape index: {0}]
  %s17 = inlined_call_operand.vmem [shape: f32[2,3,384], index: 17, kind: output, shape index: {1}]
  %18 = xla_tuple %s16, %s17
  %s19 = sld [smem:[#allocation0]]
  $region105: #{dec_style_block_forward.1} parent=0
    _
  %s21 = ssub.s32 1, %s19
  %s22 = scalar_select 0, %s21, %s19
  loop: start=0, step=1, limit=4
  $region2: #{dec_style_block_forward.1} parent=0 // loop_pre_header
    _
  $region3: #{dec_style_block_forward.1} parent=0 // loop_header
    %s24 = sphi 0, %s28
    %p25 = scmp.ge.s32.totalorder %s24, 4
    %s34 = sphi 0, %s36
    %s37 = sphi 0, %s34
    %s38 = sphi 0, %s37
    %s54 = sphi 0, %s38
    %s60 = sphi 0, %s62
    %s63 = sphi 0, %s60
    %s64 = sphi 0, %s63
    %s80 = sphi 0, %s64
    %s86 = sphi 0, %s88
    %s89 = sphi 0, %s86
    %s90 = sphi 0, %s89
    %s106 = sphi 0, %s90
    %s112 = sphi 0, %s114
    %s115 = sphi 0, %s112
    %s116 = sphi 0, %s115
    %s132 = sphi 0, %s116
    %s136 = sphi 0, %s136
    %s138 = sphi 0, %s136
    %s139 = sphi 0, %s138
    %s153 = sphi 0, %s139
    %s157 = sphi 0, %s157
    %s159 = sphi 0, %s157
    %s160 = sphi 0, %s159
    %s174 = sphi 0, %s160
    %s178 = sphi 0, %s178
    %s180 = sphi 0, %s178
    %s181 = sphi 0, %s180
    %s195 = sphi 0, %s181
    %s199 = sphi 0, %s199
    %s201 = sphi 0, %s199
    %s202 = sphi 0, %s201
    %s216 = sphi 0, %s202
    %s220 = sphi 0, %s220
    %s222 = sphi 0, %s220
    %s223 = sphi 0, %s222
    %s237 = sphi 0, %s223
    %s241 = sphi 0, %s241
    %s243 = sphi 0, %s241
    %s244 = sphi 0, %s243
    %s258 = sphi 0, %s244
    %s262 = sphi 0, %s262
    %s264 = sphi 0, %s262
    %s265 = sphi 0, %s264
    %s279 = sphi 0, %s265
    %s283 = sphi 0, %s283
    %s285 = sphi 0, %s283
    %s286 = sphi 0, %s285
    %s300 = sphi 0, %s286
    %s304 = sphi 0, %s304
    %s306 = sphi 0, %s304
    %s307 = sphi 0, %s306
    %s321 = sphi 0, %s307
    %s325 = sphi 0, %s325
    %s327 = sphi 0, %s325
    %s328 = sphi 0, %s327
    %s342 = sphi 0, %s328
    %s346 = sphi 0, %s346
    %s348 = sphi 0, %s346
    %s349 = sphi 0, %s348
    %s363 = sphi 0, %s349
    %s367 = sphi 0, %s367
    %s369 = sphi 0, %s367
    %s370 = sphi 0, %s369
    %s384 = sphi 0, %s370
    %s390 = sphi 0, %s392
    %s393 = sphi 0, %s390
    %s394 = sphi 0, %s393
    %s410 = sphi 0, %s394
    %s416 = sphi 0, %s418
    %s419 = sphi 0, %s416
    %s420 = sphi 0, %s419
    %s436 = sphi 0, %s420
  $region4: #{dec_style_block_forward.1} parent=0 // loop_header_branch
    %27 = sbr.rel (%p25) target = $region8
  $region5: #{dec_style_block_forward.1} parent=0 // loop_body
    %s29 = ssub.s32 %s24, 1
    %s30 = ssub.s32 %s24, 2
    %s31 = sadd.s32 %s24, 1
    %s32 = ssub.s32 %s24, %s31
    %p33 = scmp.eq.s32.totalorder %s32, 0
    %s35 = sadd.s32 %s34, 1
    %s36 = scalar_select %p33, %s34, %s35
    %p39 = pneg %p33
    %p40 = scmp.eq.s32.totalorder %s24, 1
    %p41 = por %p39, %p40
    %p42 = scmp.ne.s32.totalorder %s34, %s37
    %p43 = scmp.eq.s32.totalorder %s24, 0
    %p44 = por %p42, %p43
    %p45 = scmp.ne.s32.totalorder %s34, %s37
    %p46 = scmp.eq.s32.totalorder %s29, 1
    %p47 = por %p45, %p46
    %p48 = scmp.ne.s32.totalorder %s37, %s38
    %p49 = scmp.eq.s32.totalorder %s29, 0
    %p50 = por %p48, %p49
    %p51 = scmp.ne.s32.totalorder %s37, %s38
    %p52 = scmp.eq.s32.totalorder %s30, 1
    %p53 = por %p51, %p52
    %p55 = scmp.ne.s32.totalorder %s38, %s54
    %p56 = scmp.eq.s32.totalorder %s30, 0
    %p57 = por %p55, %p56
    %s58 = ssub.s32 %s24, %s31
    %p59 = scmp.eq.s32.totalorder %s58, 0
    %s61 = sadd.s32 %s60, 1
    %s62 = scalar_select %p59, %s60, %s61
    %p65 = pneg %p59
    %p66 = scmp.eq.s32.totalorder %s24, 1
    %p67 = por %p65, %p66
    %p68 = scmp.ne.s32.totalorder %s60, %s63
    %p69 = scmp.eq.s32.totalorder %s24, 0
    %p70 = por %p68, %p69
    %p71 = scmp.ne.s32.totalorder %s60, %s63
    %p72 = scmp.eq.s32.totalorder %s29, 1
    %p73 = por %p71, %p72
    %p74 = scmp.ne.s32.totalorder %s63, %s64
    %p75 = scmp.eq.s32.totalorder %s29, 0
    %p76 = por %p74, %p75
    %p77 = scmp.ne.s32.totalorder %s63, %s64
    %p78 = scmp.eq.s32.totalorder %s30, 1
    %p79 = por %p77, %p78
    %p81 = scmp.ne.s32.totalorder %s64, %s80
    %p82 = scmp.eq.s32.totalorder %s30, 0
    %p83 = por %p81, %p82
    %s84 = ssub.s32 %s24, %s31
    %p85 = scmp.eq.s32.totalorder %s84, 0
    %s87 = sadd.s32 %s86, 1
    %s88 = scalar_select %p85, %s86, %s87
    %p91 = pneg %p85
    %p92 = scmp.eq.s32.totalorder %s24, 1
    %p93 = por %p91, %p92
    %p94 = scmp.ne.s32.totalorder %s86, %s89
    %p95 = scmp.eq.s32.totalorder %s24, 0
    %p96 = por %p94, %p95
    %p97 = scmp.ne.s32.totalorder %s86, %s89
    %p98 = scmp.eq.s32.totalorder %s29, 1
    %p99 = por %p97, %p98
    %p100 = scmp.ne.s32.totalorder %s89, %s90
    %p101 = scmp.eq.s32.totalorder %s29, 0
    %p102 = por %p100, %p101
    %p103 = scmp.ne.s32.totalorder %s89, %s90
    %p104 = scmp.eq.s32.totalorder %s30, 1
    %p105 = por %p103, %p104
    %p107 = scmp.ne.s32.totalorder %s90, %s106
    %p108 = scmp.eq.s32.totalorder %s30, 0
    %p109 = por %p107, %p108
    %s110 = ssub.s32 %s24, %s31
    %p111 = scmp.eq.s32.totalorder %s110, 0
    %s113 = sadd.s32 %s112, 1
    %s114 = scalar_select %p111, %s112, %s113
    %p117 = pneg %p111
    %p118 = scmp.eq.s32.totalorder %s24, 1
    %p119 = por %p117, %p118
    %p120 = scmp.ne.s32.totalorder %s112, %s115
    %p121 = scmp.eq.s32.totalorder %s24, 0
    %p122 = por %p120, %p121
    %p123 = scmp.ne.s32.totalorder %s112, %s115
    %p124 = scmp.eq.s32.totalorder %s29, 1
    %p125 = por %p123, %p124
    %p126 = scmp.ne.s32.totalorder %s115, %s116
    %p127 = scmp.eq.s32.totalorder %s29, 0
    %p128 = por %p126, %p127
    %p129 = scmp.ne.s32.totalorder %s115, %s116
    %p130 = scmp.eq.s32.totalorder %s30, 1
    %p131 = por %p129, %p130
    %p133 = scmp.ne.s32.totalorder %s116, %s132
    %p134 = scmp.eq.s32.totalorder %s30, 0
    %p135 = por %p133, %p134
    %s137 = sadd.s32 %s136, 1
    %p140 = scmp.eq.s32.totalorder %s24, 1
    %p141 = scmp.ne.s32.totalorder %s136, %s138
    %p142 = scmp.eq.s32.totalorder %s24, 0
    %p143 = por %p141, %p142
    %p144 = scmp.ne.s32.totalorder %s136, %s138
    %p145 = scmp.eq.s32.totalorder %s29, 1
    %p146 = por %p144, %p145
    %p147 = scmp.ne.s32.totalorder %s138, %s139
    %p148 = scmp.eq.s32.totalorder %s29, 0
    %p149 = por %p147, %p148
    %p150 = scmp.ne.s32.totalorder %s138, %s139
    %p151 = scmp.eq.s32.totalorder %s30, 1
    %p152 = por %p150, %p151
    %p154 = scmp.ne.s32.totalorder %s139, %s153
    %p155 = scmp.eq.s32.totalorder %s30, 0
    %p156 = por %p154, %p155
    %s158 = sadd.s32 %s157, 1
    %p161 = scmp.eq.s32.totalorder %s24, 1
    %p162 = scmp.ne.s32.totalorder %s157, %s159
    %p163 = scmp.eq.s32.totalorder %s24, 0
    %p164 = por %p162, %p163
    %p165 = scmp.ne.s32.totalorder %s157, %s159
    %p166 = scmp.eq.s32.totalorder %s29, 1
    %p167 = por %p165, %p166
    %p168 = scmp.ne.s32.totalorder %s159, %s160
    %p169 = scmp.eq.s32.totalorder %s29, 0
    %p170 = por %p168, %p169
    %p171 = scmp.ne.s32.totalorder %s159, %s160
    %p172 = scmp.eq.s32.totalorder %s30, 1
    %p173 = por %p171, %p172
    %p175 = scmp.ne.s32.totalorder %s160, %s174
    %p176 = scmp.eq.s32.totalorder %s30, 0
    %p177 = por %p175, %p176
    %s179 = sadd.s32 %s178, 1
    %p182 = scmp.eq.s32.totalorder %s24, 1
    %p183 = scmp.ne.s32.totalorder %s178, %s180
    %p184 = scmp.eq.s32.totalorder %s24, 0
    %p185 = por %p183, %p184
    %p186 = scmp.ne.s32.totalorder %s178, %s180
    %p187 = scmp.eq.s32.totalorder %s29, 1
    %p188 = por %p186, %p187
    %p189 = scmp.ne.s32.totalorder %s180, %s181
    %p190 = scmp.eq.s32.totalorder %s29, 0
    %p191 = por %p189, %p190
    %p192 = scmp.ne.s32.totalorder %s180, %s181
    %p193 = scmp.eq.s32.totalorder %s30, 1
    %p194 = por %p192, %p193
    %p196 = scmp.ne.s32.totalorder %s181, %s195
    %p197 = scmp.eq.s32.totalorder %s30, 0
    %p198 = por %p196, %p197
    %s200 = sadd.s32 %s199, 1
    %p203 = scmp.eq.s32.totalorder %s24, 1
    %p204 = scmp.ne.s32.totalorder %s199, %s201
    %p205 = scmp.eq.s32.totalorder %s24, 0
    %p206 = por %p204, %p205
    %p207 = scmp.ne.s32.totalorder %s199, %s201
    %p208 = scmp.eq.s32.totalorder %s29, 1
    %p209 = por %p207, %p208
    %p210 = scmp.ne.s32.totalorder %s201, %s202
    %p211 = scmp.eq.s32.totalorder %s29, 0
    %p212 = por %p210, %p211
    %p213 = scmp.ne.s32.totalorder %s201, %s202
    %p214 = scmp.eq.s32.totalorder %s30, 1
    %p215 = por %p213, %p214
    %p217 = scmp.ne.s32.totalorder %s202, %s216
    %p218 = scmp.eq.s32.totalorder %s30, 0
    %p219 = por %p217, %p218
    %s221 = sadd.s32 %s220, 1
    %p224 = scmp.eq.s32.totalorder %s24, 1
    %p225 = scmp.ne.s32.totalorder %s220, %s222
    %p226 = scmp.eq.s32.totalorder %s24, 0
    %p227 = por %p225, %p226
    %p228 = scmp.ne.s32.totalorder %s220, %s222
    %p229 = scmp.eq.s32.totalorder %s29, 1
    %p230 = por %p228, %p229
    %p231 = scmp.ne.s32.totalorder %s222, %s223
    %p232 = scmp.eq.s32.totalorder %s29, 0
    %p233 = por %p231, %p232
    %p234 = scmp.ne.s32.totalorder %s222, %s223
    %p235 = scmp.eq.s32.totalorder %s30, 1
    %p236 = por %p234, %p235
    %p238 = scmp.ne.s32.totalorder %s223, %s237
    %p239 = scmp.eq.s32.totalorder %s30, 0
    %p240 = por %p238, %p239
    %s242 = sadd.s32 %s241, 1
    %p245 = scmp.eq.s32.totalorder %s24, 1
    %p246 = scmp.ne.s32.totalorder %s241, %s243
    %p247 = scmp.eq.s32.totalorder %s24, 0
    %p248 = por %p246, %p247
    %p249 = scmp.ne.s32.totalorder %s241, %s243
    %p250 = scmp.eq.s32.totalorder %s29, 1
    %p251 = por %p249, %p250
    %p252 = scmp.ne.s32.totalorder %s243, %s244
    %p253 = scmp.eq.s32.totalorder %s29, 0
    %p254 = por %p252, %p253
    %p255 = scmp.ne.s32.totalorder %s243, %s244
    %p256 = scmp.eq.s32.totalorder %s30, 1
    %p257 = por %p255, %p256
    %p259 = scmp.ne.s32.totalorder %s244, %s258
    %p260 = scmp.eq.s32.totalorder %s30, 0
    %p261 = por %p259, %p260
    %s263 = sadd.s32 %s262, 1
    %p266 = scmp.eq.s32.totalorder %s24, 1
    %p267 = scmp.ne.s32.totalorder %s262, %s264
    %p268 = scmp.eq.s32.totalorder %s24, 0
    %p269 = por %p267, %p268
    %p270 = scmp.ne.s32.totalorder %s262, %s264
    %p271 = scmp.eq.s32.totalorder %s29, 1
    %p272 = por %p270, %p271
    %p273 = scmp.ne.s32.totalorder %s264, %s265
    %p274 = scmp.eq.s32.totalorder %s29, 0
    %p275 = por %p273, %p274
    %p276 = scmp.ne.s32.totalorder %s264, %s265
    %p277 = scmp.eq.s32.totalorder %s30, 1
    %p278 = por %p276, %p277
    %p280 = scmp.ne.s32.totalorder %s265, %s279
    %p281 = scmp.eq.s32.totalorder %s30, 0
    %p282 = por %p280, %p281
    %s284 = sadd.s32 %s283, 1
    %p287 = scmp.eq.s32.totalorder %s24, 1
    %p288 = scmp.ne.s32.totalorder %s283, %s285
    %p289 = scmp.eq.s32.totalorder %s24, 0
    %p290 = por %p288, %p289
    %p291 = scmp.ne.s32.totalorder %s283, %s285
    %p292 = scmp.eq.s32.totalorder %s29, 1
    %p293 = por %p291, %p292
    %p294 = scmp.ne.s32.totalorder %s285, %s286
    %p295 = scmp.eq.s32.totalorder %s29, 0
    %p296 = por %p294, %p295
    %p297 = scmp.ne.s32.totalorder %s285, %s286
    %p298 = scmp.eq.s32.totalorder %s30, 1
    %p299 = por %p297, %p298
    %p301 = scmp.ne.s32.totalorder %s286, %s300
    %p302 = scmp.eq.s32.totalorder %s30, 0
    %p303 = por %p301, %p302
    %s305 = sadd.s32 %s304, 1
    %p308 = scmp.eq.s32.totalorder %s24, 1
    %p309 = scmp.ne.s32.totalorder %s304, %s306
    %p310 = scmp.eq.s32.totalorder %s24, 0
    %p311 = por %p309, %p310
    %p312 = scmp.ne.s32.totalorder %s304, %s306
    %p313 = scmp.eq.s32.totalorder %s29, 1
    %p314 = por %p312, %p313
    %p315 = scmp.ne.s32.totalorder %s306, %s307
    %p316 = scmp.eq.s32.totalorder %s29, 0
    %p317 = por %p315, %p316
    %p318 = scmp.ne.s32.totalorder %s306, %s307
    %p319 = scmp.eq.s32.totalorder %s30, 1
    %p320 = por %p318, %p319
    %p322 = scmp.ne.s32.totalorder %s307, %s321
    %p323 = scmp.eq.s32.totalorder %s30, 0
    %p324 = por %p322, %p323
    %s326 = sadd.s32 %s325, 1
    %p329 = scmp.eq.s32.totalorder %s24, 1
    %p330 = scmp.ne.s32.totalorder %s325, %s327
    %p331 = scmp.eq.s32.totalorder %s24, 0
    %p332 = por %p330, %p331
    %p333 = scmp.ne.s32.totalorder %s325, %s327
    %p334 = scmp.eq.s32.totalorder %s29, 1
    %p335 = por %p333, %p334
    %p336 = scmp.ne.s32.totalorder %s327, %s328
    %p337 = scmp.eq.s32.totalorder %s29, 0
    %p338 = por %p336, %p337
    %p339 = scmp.ne.s32.totalorder %s327, %s328
    %p340 = scmp.eq.s32.totalorder %s30, 1
    %p341 = por %p339, %p340
    %p343 = scmp.ne.s32.totalorder %s328, %s342
    %p344 = scmp.eq.s32.totalorder %s30, 0
    %p345 = por %p343, %p344
    %s347 = sadd.s32 %s346, 1
    %p350 = scmp.eq.s32.totalorder %s24, 1
    %p351 = scmp.ne.s32.totalorder %s346, %s348
    %p352 = scmp.eq.s32.totalorder %s24, 0
    %p353 = por %p351, %p352
    %p354 = scmp.ne.s32.totalorder %s346, %s348
    %p355 = scmp.eq.s32.totalorder %s29, 1
    %p356 = por %p354, %p355
    %p357 = scmp.ne.s32.totalorder %s348, %s349
    %p358 = scmp.eq.s32.totalorder %s29, 0
    %p359 = por %p357, %p358
    %p360 = scmp.ne.s32.totalorder %s348, %s349
    %p361 = scmp.eq.s32.totalorder %s30, 1
    %p362 = por %p360, %p361
    %p364 = scmp.ne.s32.totalorder %s349, %s363
    %p365 = scmp.eq.s32.totalorder %s30, 0
    %p366 = por %p364, %p365
    %s368 = sadd.s32 %s367, 1
    %p371 = scmp.eq.s32.totalorder %s24, 1
    %p372 = scmp.ne.s32.totalorder %s367, %s369
    %p373 = scmp.eq.s32.totalorder %s24, 0
    %p374 = por %p372, %p373
    %p375 = scmp.ne.s32.totalorder %s367, %s369
    %p376 = scmp.eq.s32.totalorder %s29, 1
    %p377 = por %p375, %p376
    %p378 = scmp.ne.s32.totalorder %s369, %s370
    %p379 = scmp.eq.s32.totalorder %s29, 0
    %p380 = por %p378, %p379
    %p381 = scmp.ne.s32.totalorder %s369, %s370
    %p382 = scmp.eq.s32.totalorder %s30, 1
    %p383 = por %p381, %p382
    %p385 = scmp.ne.s32.totalorder %s370, %s384
    %p386 = scmp.eq.s32.totalorder %s30, 0
    %p387 = por %p385, %p386
    %s388 = ssub.s32 %s24, %s31
    %p389 = scmp.eq.s32.totalorder %s388, 0
    %s391 = sadd.s32 %s390, 1
    %s392 = scalar_select %p389, %s390, %s391
    %p395 = pneg %p389
    %p396 = scmp.eq.s32.totalorder %s24, 1
    %p397 = por %p395, %p396
    %p398 = scmp.ne.s32.totalorder %s390, %s393
    %p399 = scmp.eq.s32.totalorder %s24, 0
    %p400 = por %p398, %p399
    %p401 = scmp.ne.s32.totalorder %s390, %s393
    %p402 = scmp.eq.s32.totalorder %s29, 1
    %p403 = por %p401, %p402
    %p404 = scmp.ne.s32.totalorder %s393, %s394
    %p405 = scmp.eq.s32.totalorder %s29, 0
    %p406 = por %p404, %p405
    %p407 = scmp.ne.s32.totalorder %s393, %s394
    %p408 = scmp.eq.s32.totalorder %s30, 1
    %p409 = por %p407, %p408
    %p411 = scmp.ne.s32.totalorder %s394, %s410
    %p412 = scmp.eq.s32.totalorder %s30, 0
    %p413 = por %p411, %p412
    %s414 = ssub.s32 %s24, %s31
    %p415 = scmp.eq.s32.totalorder %s414, 0
    %s417 = sadd.s32 %s416, 1
    %s418 = scalar_select %p415, %s416, %s417
    %p421 = pneg %p415
    %p422 = scmp.eq.s32.totalorder %s24, 1
    %p423 = por %p421, %p422
    %p424 = scmp.ne.s32.totalorder %s416, %s419
    %p425 = scmp.eq.s32.totalorder %s24, 0
    %p426 = por %p424, %p425
    %p427 = scmp.ne.s32.totalorder %s416, %s419
    %p428 = scmp.eq.s32.totalorder %s29, 1
    %p429 = por %p427, %p428
    %p430 = scmp.ne.s32.totalorder %s419, %s420
    %p431 = scmp.eq.s32.totalorder %s29, 0
    %p432 = por %p430, %p431
    %p433 = scmp.ne.s32.totalorder %s419, %s420
    %p434 = scmp.eq.s32.totalorder %s30, 1
    %p435 = por %p433, %p434
    %p437 = scmp.ne.s32.totalorder %s420, %s436
    %p438 = scmp.eq.s32.totalorder %s30, 0
    %p439 = por %p437, %p438
    %p440 = scmp.le.s32.totalorder 1, %s24
    %p441 = scmp.lt.s32.totalorder %s24, 3
    %p442 = pnand %p440, %p441
    %p443 = pneg %p442
    // Predicated region
    $region9: #{dec_style_block_forward.1} parent=5 // pred_check
      _
    $region10: #{dec_style_block_forward.1} parent=5 // pred_check_branch
      %445 = sbr.rel (%p442) target = $region12
    $region11: #{dec_style_block_forward.1} parent=5 // pred_region
      %s446 = ssub.s32 %s24, 1
      // Predicated region
      $region13: #{dec_style_block_forward.1} parent=11 // pred_check
        %p447 = pneg %p149
      $region14: #{dec_style_block_forward.1} parent=11 // pred_check_branch
        %449 = sbr.rel (%p447) target = $region16
      $region15: #{dec_style_block_forward.1} parent=11 // pred_region
        _
      $region16: #{dec_style_block_forward.1} parent=11 // pred_fallthru
        _
      // Predicated region
      $region17: #{dec_style_block_forward.1} parent=11 // pred_check
        %p450 = pneg %p170
      $region18: #{dec_style_block_forward.1} parent=11 // pred_check_branch
        %452 = sbr.rel (%p450) target = $region20
      $region19: #{dec_style_block_forward.1} parent=11 // pred_region
        _
      $region20: #{dec_style_block_forward.1} parent=11 // pred_fallthru
        _
      // Predicated region
      $region21: #{dec_style_block_forward.1} parent=11 // pred_check
        %p453 = pneg %p191
      $region22: #{dec_style_block_forward.1} parent=11 // pred_check_branch
        %455 = sbr.rel (%p453) target = $region24
      $region23: #{dec_style_block_forward.1} parent=11 // pred_region
        _
      $region24: #{dec_style_block_forward.1} parent=11 // pred_fallthru
        _
      // Predicated region
      $region25: #{dec_style_block_forward.1} parent=11 // pred_check
        %p456 = pneg %p212
      $region26: #{dec_style_block_forward.1} parent=11 // pred_check_branch
        %458 = sbr.rel (%p456) target = $region28
      $region27: #{dec_style_block_forward.1} parent=11 // pred_region
        _
      $region28: #{dec_style_block_forward.1} parent=11 // pred_fallthru
        _
      // Predicated region
      $region29: #{dec_style_block_forward.1} parent=11 // pred_check
        %p459 = pneg %p233
      $region30: #{dec_style_block_forward.1} parent=11 // pred_check_branch
        %461 = sbr.rel (%p459) target = $region32
      $region31: #{dec_style_block_forward.1} parent=11 // pred_region
        _
      $region32: #{dec_style_block_forward.1} parent=11 // pred_fallthru
        _
      // Predicated region
      $region33: #{dec_style_block_forward.1} parent=11 // pred_check
        %p462 = pneg %p254
      $region34: #{dec_style_block_forward.1} parent=11 // pred_check_branch
        %464 = sbr.rel (%p462) target = $region36
      $region35: #{dec_style_block_forward.1} parent=11 // pred_region
        _
      $region36: #{dec_style_block_forward.1} parent=11 // pred_fallthru
        _
      // Predicated region
      $region37: #{dec_style_block_forward.1} parent=11 // pred_check
        %p465 = pneg %p275
      $region38: #{dec_style_block_forward.1} parent=11 // pred_check_branch
        %467 = sbr.rel (%p465) target = $region40
      $region39: #{dec_style_block_forward.1} parent=11 // pred_region
        _
      $region40: #{dec_style_block_forward.1} parent=11 // pred_fallthru
        _
      // Predicated region
      $region41: #{dec_style_block_forward.1} parent=11 // pred_check
        %p468 = pneg %p296
      $region42: #{dec_style_block_forward.1} parent=11 // pred_check_branch
        %470 = sbr.rel (%p468) target = $region44
      $region43: #{dec_style_block_forward.1} parent=11 // pred_region
        _
      $region44: #{dec_style_block_forward.1} parent=11 // pred_fallthru
        _
      // Predicated region
      $region45: #{dec_style_block_forward.1} parent=11 // pred_check
        %p471 = pneg %p317
      $region46: #{dec_style_block_forward.1} parent=11 // pred_check_branch
        %473 = sbr.rel (%p471) target = $region48
      $region47: #{dec_style_block_forward.1} parent=11 // pred_region
        _
      $region48: #{dec_style_block_forward.1} parent=11 // pred_fallthru
        _
      // Predicated region
      $region49: #{dec_style_block_forward.1} parent=11 // pred_check
        %p474 = pneg %p338
      $region50: #{dec_style_block_forward.1} parent=11 // pred_check_branch
        %476 = sbr.rel (%p474) target = $region52
      $region51: #{dec_style_block_forward.1} parent=11 // pred_region
        _
      $region52: #{dec_style_block_forward.1} parent=11 // pred_fallthru
        _
      // Predicated region
      $region53: #{dec_style_block_forward.1} parent=11 // pred_check
        %p477 = pneg %p359
      $region54: #{dec_style_block_forward.1} parent=11 // pred_check_branch
        %479 = sbr.rel (%p477) target = $region56
      $region55: #{dec_style_block_forward.1} parent=11 // pred_region
        _
      $region56: #{dec_style_block_forward.1} parent=11 // pred_fallthru
        _
      // Predicated region
      $region57: #{dec_style_block_forward.1} parent=11 // pred_check
        %p480 = pneg %p380
      $region58: #{dec_style_block_forward.1} parent=11 // pred_check_branch
        %482 = sbr.rel (%p480) target = $region60
      $region59: #{dec_style_block_forward.1} parent=11 // pred_region
        _
      $region60: #{dec_style_block_forward.1} parent=11 // pred_fallthru
        _
    $region12: #{dec_style_block_forward.1} parent=5 // pred_fallthru
      _
    %p483 = scmp.lt.s32.totalorder %s24, 2
    // Predicated region
    $region61: #{dec_style_block_forward.1} parent=5 // pred_check
      %p484 = pneg %p483
    $region62: #{dec_style_block_forward.1} parent=5 // pred_check_branch
      %486 = sbr.rel (%p484) target = $region64
    $region63: #{dec_style_block_forward.1} parent=5 // pred_region
      // Predicated region
      $region65: #{dec_style_block_forward.1} parent=63 // pred_check
        %p487 = pneg %p44
      $region66: #{dec_style_block_forward.1} parent=63 // pred_check_branch
        %489 = sbr.rel (%p487) target = $region68
      $region67: #{dec_style_block_forward.1} parent=63 // pred_region
        %p490 = scmp.lt.s32.totalorder %s24, 1
        %s491 = scalar_select %p490, %s24, 1
        %s492 = smul.addr %s491, 2
        %s493 = smul.addr %s492, 8
        %s494 = scalar_lea.vmem %s0, %s493
      $region68: #{dec_style_block_forward.1} parent=63 // pred_fallthru
        _
      // Predicated region
      $region69: #{dec_style_block_forward.1} parent=63 // pred_check
        %p495 = pneg %p70
      $region70: #{dec_style_block_forward.1} parent=63 // pred_check_branch
        %497 = sbr.rel (%p495) target = $region72
      $region71: #{dec_style_block_forward.1} parent=63 // pred_region
        %p498 = scmp.lt.s32.totalorder %s24, 1
        %s499 = scalar_select %p498, %s24, 1
        %s500 = smul.addr %s499, 3
        %s501 = smul.addr %s500, 8
        %s502 = scalar_lea.vmem %s1, %s501
      $region72: #{dec_style_block_forward.1} parent=63 // pred_fallthru
        _
      // Predicated region
      $region73: #{dec_style_block_forward.1} parent=63 // pred_check
        %p503 = pneg %p96
      $region74: #{dec_style_block_forward.1} parent=63 // pred_check_branch
        %505 = sbr.rel (%p503) target = $region76
      $region75: #{dec_style_block_forward.1} parent=63 // pred_region
        %p506 = scmp.lt.s32.totalorder %s24, 1
        %s507 = scalar_select %p506, %s24, 1
        %s508 = smul.addr %s507, 3
        %s509 = smul.addr %s508, 8
        %s510 = scalar_lea.vmem %s2, %s509
      $region76: #{dec_style_block_forward.1} parent=63 // pred_fallthru
        _
      // Predicated region
      $region77: #{dec_style_block_forward.1} parent=63 // pred_check
        %p511 = pneg %p122
      $region78: #{dec_style_block_forward.1} parent=63 // pred_check_branch
        %513 = sbr.rel (%p511) target = $region80
      $region79: #{dec_style_block_forward.1} parent=63 // pred_region
        %p514 = scmp.lt.s32.totalorder %s24, 1
        %s515 = scalar_select %p514, %s24, 1
        %s516 = smul.addr %s515, 3
        %s517 = smul.addr %s516, 4
        %s518 = scalar_lea.vmem %s3, %s517
      $region80: #{dec_style_block_forward.1} parent=63 // pred_fallthru
        _
    $region64: #{dec_style_block_forward.1} parent=5 // pred_fallthru
      _
    %p519 = scmp.le.s32.totalorder 1, %s24
    %p520 = scmp.lt.s32.totalorder %s24, 3
    %p521 = pnand %p519, %p520
    %p522 = pneg %p521
    // Predicated region
    $region81: #{dec_style_block_forward.1} parent=5 // pred_check
      _
    $region82: #{dec_style_block_forward.1} parent=5 // pred_check_branch
      %524 = sbr.rel (%p521) target = $region84
    $region83: #{dec_style_block_forward.1} parent=5 // pred_region
      %s525 = ssub.s32 %s24, 1
      %p526 = scmp.lt.s32.totalorder %s29, 1
      %s527 = scalar_select %p526, %s29, 1
      %s528 = smul.addr %s527, 2
      %s529 = smul.addr %s528, 8
      %s530 = scalar_lea.vmem %s0, %s529
      %p531 = pneg %p50
      %p532 = pneg %p47
      %p533 = scmp.lt.s32.totalorder %s29, 1
      %s534 = scalar_select %p533, %s29, 1
      %s535 = smul.addr %s534, 3
      %s536 = smul.addr %s535, 8
      %s537 = scalar_lea.vmem %s1, %s536
      %p538 = pneg %p76
      %p539 = pneg %p73
      %p540 = scmp.lt.s32.totalorder %s29, 1
      %s541 = scalar_select %p540, %s29, 1
      %s542 = smul.addr %s541, 3
      %s543 = smul.addr %s542, 8
      %s544 = scalar_lea.vmem %s2, %s543
      %p545 = pneg %p102
      %p546 = pneg %p99
      %p547 = scmp.lt.s32.totalorder %s29, 1
      %s548 = scalar_select %p547, %s29, 1
      %s549 = smul.addr %s548, 3
      %s550 = smul.addr %s549, 4
      %s551 = scalar_lea.vmem %s3, %s550
      %p552 = pneg %p128
      %p553 = pneg %p125
      %p554 = pneg %p149
      %p555 = pneg %p146
      %p556 = pneg %p170
      %p557 = pneg %p167
      %p558 = pneg %p191
      %p559 = pneg %p188
      %p560 = pneg %p212
      %p561 = pneg %p209
      %p562 = pneg %p233
      %p563 = pneg %p230
      %p564 = pneg %p254
      %p565 = pneg %p251
      %p566 = pneg %p275
      %p567 = pneg %p272
      %p568 = pneg %p296
      %p569 = pneg %p293
      %p570 = pneg %p317
      %p571 = pneg %p314
      %p572 = pneg %p338
      %p573 = pneg %p335
      %p574 = pneg %p359
      %p575 = pneg %p356
      %p576 = pneg %p380
      %p577 = pneg %p377
      %p578 = pneg %p406
      %p579 = pneg %p403
      %p580 = scmp.lt.s32.totalorder %s29, 1
      %s581 = scalar_select %p580, %s29, 1
      %s582 = smul.addr %s581, 3
      %s583 = smul.addr %s582, 8
      %s584 = scalar_lea.vmem %s16, %s583
      %p585 = pneg %p432
      %p586 = pneg %p429
      %p587 = scmp.lt.s32.totalorder %s29, 1
      %s588 = scalar_select %p587, %s29, 1
      %s589 = smul.addr %s588, 3
      %s590 = smul.addr %s589, 4
      %s591 = scalar_lea.vmem %s17, %s590
      %p592 = scmp.lt.s32.totalorder %s29, 1
      %s593 = scalar_select %p592, %s29, 1
      %s594 = smul.addr %s593, 2
      %s595 = smul.addr %s594, 8
      %s596 = scalar_lea.vmem %s0, %s595
      %p597 = scmp.lt.s32.totalorder %s29, 1
      %s598 = scalar_select %p597, %s29, 1
      %s599 = smul.addr %s598, 3
      %s600 = smul.addr %s599, 8
      %s601 = scalar_lea.vmem %s1, %s600
      %p602 = scmp.lt.s32.totalorder %s29, 1
      %s603 = scalar_select %p602, %s29, 1
      %s604 = smul.addr %s603, 3
      %s605 = smul.addr %s604, 8
      %s606 = scalar_lea.vmem %s2, %s605
      %p607 = scmp.lt.s32.totalorder %s29, 1
      %s608 = scalar_select %p607, %s29, 1
      %s609 = smul.addr %s608, 3
      %s610 = smul.addr %s609, 4
      %s611 = scalar_lea.vmem %s3, %s610
      %p612 = scmp.lt.s32.totalorder %s29, 1
      %s613 = scalar_select %p612, %s29, 1
      %s614 = smul.addr %s613, 3
      %s615 = smul.addr %s614, 8
      %s616 = scalar_lea.vmem %s16, %s615
      %p617 = scmp.lt.s32.totalorder %s29, 1
      %s618 = scalar_select %p617, %s29, 1
      %s619 = smul.addr %s618, 3
      %s620 = smul.addr %s619, 4
      %s621 = scalar_lea.vmem %s17, %s620
      %v622 = vld [vmem:[%s596] sm:$0xff]
      %v623 = vld [vmem:[%s596 + $0x8] sm:$0xff]
      %v624 = vld [vmem:[%s601] sm:$0xff]
      %v625 = vld [vmem:[%s601 + $0x8] sm:$0xff]
      %v626 = vld [vmem:[%s601 + $0x10] sm:$0xff]
      %v627 = vld [vmem:[%s606] sm:$0xff]
      %v628 = vld [vmem:[%s606 + $0x8] sm:$0xff]
      %v629 = vld [vmem:[%s606 + $0x10] sm:$0xff]
      %v630 = vld [vmem:[%s611] sm:$0x77]
      %v631 = vld [vmem:[%s611 + $0x8] sm:$0x7]
      %v632 = vld [vmem:[%s4] ss:$2 sm:$0x7]
      %s633 = scalar_lea.vmem %s4, 1
      %v634 = vld [vmem:[%s633] ss:$2 sm:$0x7]
      %v635 = vld [vmem:[%s5] sm:$0xff]
      %v636 = vld [vmem:[%s5 + $0x8] sm:$0xff]
      %v637 = vld [vmem:[%s5 + $0x10] sm:$0xff]
      %vm638 = vcmask 130048
      %v640 = vsel %vm638, %v635, 0
      %v643 = vsel %vm638, %v636, 0
      %v646 = vsel %vm638, %v637, 0
      %648 = vmatpush.msra.mxu0 0.0
      %649 = vmatpush.msra.mxu0 0.0
      %650 = vmatpush.msra.mxu0 0.0
      %651 = vmatpush.msra.mxu0 0.0
      %652 = vmatpush.msra.mxu0 0.0
      %653 = vmatpush.msra.mxu0 0.0
      %654 = vmatpush.msra.mxu0 0.0
      %655 = vmatpush.msra.mxu0 0.0
      %656 = vmatpush.msra.mxu0 0.0
      %657 = vmatpush.msra.mxu0 0.0
      %658 = vmatpush.msra.mxu0 0.0
      %659 = vmatpush.msra.mxu0 0.0
      %660 = vmatpush.msra.mxu0 0.0
      %661 = vmatpush.msra.mxu0 0.0
      %662 = vmatpush.msra.mxu0 %v623
      %663 = vmatpush.msra.mxu0 %v622
      %664 = vmatmul.f32.gmra.mxu0 %v640
      %v665 = vpop.f32.mrf.mxu0
      %v666 = vadd.f32 0.0, %v665
      %667 = vmatmul.f32.gmra.mxu0 %v643
      %v668 = vpop.f32.mrf.mxu0
      %v669 = vadd.f32 0.0, %v668
      %670 = vmatmul.f32.gmra.mxu0 %v646
      %v671 = vpop.f32.mrf.mxu0
      %v672 = vadd.f32 0.0, %v671
      %673 = vdwg.mxu0
      %v674 = vmul.f32 %v666, 0.25
      %v675 = vmul.f32 %v669, 0.25
      %v676 = vmul.f32 %v672, 0.25
      %v677 = vld [vmem:[%s6] sm:$0xff]
      %v678 = vld [vmem:[%s6 + $0x8] sm:$0xff]
      %v679 = vld [vmem:[%s6 + $0x10] sm:$0xff]
      %v680 = vadd.f32 %v674, %v677
      %v681 = vadd.f32 %v675, %v678
      %v682 = vadd.f32 %v676, %v679
      %v683 = vld [vmem:[%s7] sm:$0xff]
      %v684 = vld [vmem:[%s7 + $0x8] sm:$0xff]
      %v685 = vld [vmem:[%s7 + $0x10] sm:$0xff]
      %v686 = vmul.f32 %v680, %v683
      %v687 = vmul.f32 %v681, %v684
      %v688 = vmul.f32 %v682, %v685
      %v689 = vld [vmem:[%s9] sm:$0xff]
      %v690 = vmul.f32 %v686, %v686
      %vm691 = vcmask 64512
      %v693 = vsel %vm691, %v689, 0
      %695 = vmatpush.msra.mxu0 0.0
      %696 = vmatpush.msra.mxu0 0.0
      %697 = vmatpush.msra.mxu0 0.0
      %698 = vmatpush.msra.mxu0 0.0
      %699 = vmatpush.msra.mxu0 0.0
      %700 = vmatpush.msra.mxu0 0.0
      %701 = vmatpush.msra.mxu0 0.0
      %702 = vmatpush.msra.mxu0 0.0
      %703 = vmatpush.msra.mxu0 0.0
      %704 = vmatpush.msra.mxu0 0.0
      %705 = vmatpush.msra.mxu0 0.0
      %706 = vmatpush.msra.mxu0 0.0
      %707 = vmatpush.msra.mxu0 0.0
      %708 = vmatpush.msra.mxu0 0.0
      %709 = vmatpush.msra.mxu0 0.0
      %710 = vmatpush.msra.mxu0 %v690
      %711 = vmatmul.f32.gmra.mxu0 %v693
      %v712 = vpop.f32.mrf.mxu0
      %v713 = vadd.f32 1e-08, %v712
      %714 = vdwg.mxu0
      %v715 = vrsqrt.pop %v713
      %v716 = vmul.f32 %v715, %v713
      %v717 = vmul.f32 %v716, %v715
      %v718 = vmul.f32 0.5, %v717
      %v719 = vsub.f32 1.5, %v718
      %v720 = vmul.f32 %v715, %v719
      %vm721 = vweird.f32 %v713
      %vm722 = vweird.f32 %v715
      %vm723 = vmor %vm721, %vm722
      %v724 = vsel %vm723, %v715, %v720
      %726 = vset.pattern.permute.xlu0 0
      %727 = vperm.xlu0 %726, %v686
      %v728 = vpop.permute.xlu0 %727
      %v730 = vmul.f32 %v624, %v728
      %v731 = vmul.f32 %v625, %v728
      %v732 = vmul.f32 %v626, %v728
      %733 = vrot.lane.b32.xlu0 %v730, 127
      %v734 = vpop.permute.xlu0 %733
      %735 = vrot.lane.b32.xlu0 %v731, 127
      %v736 = vpop.permute.xlu0 %735
      %737 = vrot.lane.b32.xlu0 %v732, 127
      %v738 = vpop.permute.xlu0 %737
      %v739 = vlaneseq
      %v740 = vand.u32 %v739, 127
      %vm741 = vcmp.lt.s32.totalorder %v740, 127
      %v742 = vsel %vm741, %v736, %v738
      %v743 = vsel %vm741, %v734, %v736
      %v744 = vsel %vm741, %v738, %v734
      %745 = vrot.lane.b32.xlu0 %v730, 126
      %v746 = vpop.permute.xlu0 %745
      %747 = vrot.lane.b32.xlu0 %v731, 126
      %v748 = vpop.permute.xlu0 %747
      %749 = vrot.lane.b32.xlu0 %v732, 126
      %v750 = vpop.permute.xlu0 %749
      %vm751 = vcmp.lt.s32.totalorder %v740, 126
      %v752 = vsel %vm751, %v748, %v750
      %v753 = vsel %vm751, %v746, %v748
      %v754 = vsel %vm751, %v750, %v746
      %755 = vrot.lane.b32.xlu0 %v730, 109
      %v756 = vpop.permute.xlu0 %755
      %757 = vrot.lane.b32.xlu0 %v731, 109
      %v758 = vpop.permute.xlu0 %757
      %759 = vrot.lane.b32.xlu0 %v732, 109
      %v760 = vpop.permute.xlu0 %759
      %vm761 = vcmp.lt.s32.totalorder %v740, 109
      %v762 = vsel %vm761, %v758, %v760
      %v763 = vsel %vm761, %v756, %v758
      %v764 = vsel %vm761, %v760, %v756
      %765 = vrot.lane.b32.xlu0 %v730, 108
      %v766 = vpop.permute.xlu0 %765
      %767 = vrot.lane.b32.xlu0 %v731, 108
      %v768 = vpop.permute.xlu0 %767
      %769 = vrot.lane.b32.xlu0 %v732, 108
      %v770 = vpop.permute.xlu0 %769
      %vm771 = vcmp.lt.s32.totalorder %v740, 108
      %v772 = vsel %vm771, %v768, %v770
      %v773 = vsel %vm771, %v766, %v768
      %v774 = vsel %vm771, %v770, %v766
      %775 = vrot.lane.b32.xlu0 %v730, 107
      %v776 = vpop.permute.xlu0 %775
      %777 = vrot.lane.b32.xlu0 %v731, 107
      %v778 = vpop.permute.xlu0 %777
      %779 = vrot.lane.b32.xlu0 %v732, 107
      %v780 = vpop.permute.xlu0 %779
      %vm781 = vcmp.lt.s32.totalorder %v740, 107
      %v782 = vsel %vm781, %v778, %v780
      %v783 = vsel %vm781, %v776, %v778
      %v784 = vsel %vm781, %v780, %v776
      %785 = vrot.lane.b32.xlu0 %v730, 90
      %v786 = vpop.permute.xlu0 %785
      %787 = vrot.lane.b32.xlu0 %v731, 90
      %v788 = vpop.permute.xlu0 %787
      %789 = vrot.lane.b32.xlu0 %v732, 90
      %v790 = vpop.permute.xlu0 %789
      %vm791 = vcmp.lt.s32.totalorder %v740, 90
      %v792 = vsel %vm791, %v788, %v790
      %v793 = vsel %vm791, %v786, %v788
      %v794 = vsel %vm791, %v790, %v786
      %795 = vrot.lane.b32.xlu0 %v730, 89
      %v796 = vpop.permute.xlu0 %795
      %797 = vrot.lane.b32.xlu0 %v731, 89
      %v798 = vpop.permute.xlu0 %797
      %799 = vrot.lane.b32.xlu0 %v732, 89
      %v800 = vpop.permute.xlu0 %799
      %vm801 = vcmp.lt.s32.totalorder %v740, 89
      %v802 = vsel %vm801, %v798, %v800
      %v803 = vsel %vm801, %v796, %v798
      %v804 = vsel %vm801, %v800, %v796
      %805 = vrot.lane.b32.xlu0 %v730, 88
      %v806 = vpop.permute.xlu0 %805
      %807 = vrot.lane.b32.xlu0 %v731, 88
      %v808 = vpop.permute.xlu0 %807
      %809 = vrot.lane.b32.xlu0 %v732, 88
      %v810 = vpop.permute.xlu0 %809
      %vm811 = vcmp.lt.s32.totalorder %v740, 88
      %v812 = vsel %vm811, %v808, %v810
      %v813 = vsel %vm811, %v806, %v808
      %v814 = vsel %vm811, %v810, %v806
      %v815 = vld [vmem:[%s8] sm:$0xff]
      %vm816 = vcmask 588800
      %v818 = vsel %vm816, %v815, 0
      %820 = vmatpush.msra.mxu0 0.0
      %821 = vmatpush.msra.mxu0 0.0
      %822 = vmatpush.msra.mxu0 0.0
      %823 = vmatpush.msra.mxu0 0.0
      %824 = vmatpush.msra.mxu0 0.0
      %825 = vmatpush.msra.mxu0 0.0
      %826 = vmatpush.msra.mxu0 0.0
      %827 = vmatpush.msra.mxu0 %v813
      %828 = vmatpush.msra.mxu0 %v803
      %829 = vmatpush.msra.mxu0 %v793
      %830 = vmatpush.msra.mxu0 %v783
      %831 = vmatpush.msra.mxu0 %v773
      %832 = vmatpush.msra.mxu0 %v763
      %833 = vmatpush.msra.mxu0 %v753
      %834 = vmatpush.msra.mxu0 %v743
      %835 = vmatpush.msra.mxu0 %v730
      %836 = vmatmul.f32.gmra.mxu0 %v818
      %v837 = vpop.f32.mrf.mxu0
      %v838 = vadd.f32 0.0, %v837
      %839 = vdwg.mxu0
      %840 = vmatpush.msra.mxu0 0.0
      %841 = vmatpush.msra.mxu0 0.0
      %842 = vmatpush.msra.mxu0 0.0
      %843 = vmatpush.msra.mxu0 0.0
      %844 = vmatpush.msra.mxu0 0.0
      %845 = vmatpush.msra.mxu0 0.0
      %846 = vmatpush.msra.mxu0 0.0
      %847 = vmatpush.msra.mxu0 %v812
      %848 = vmatpush.msra.mxu0 %v802
      %849 = vmatpush.msra.mxu0 %v792
      %850 = vmatpush.msra.mxu0 %v782
      %851 = vmatpush.msra.mxu0 %v772
      %852 = vmatpush.msra.mxu0 %v762
      %853 = vmatpush.msra.mxu0 %v752
      %854 = vmatpush.msra.mxu0 %v742
      %855 = vmatpush.msra.mxu0 %v731
      %856 = vmatmul.f32.gmra.mxu0 %v818
      %v857 = vpop.f32.mrf.mxu0
      %v858 = vadd.f32 0.0, %v857
      %859 = vdwg.mxu0
      %860 = vmatpush.msra.mxu0 0.0
      %861 = vmatpush.msra.mxu0 0.0
      %862 = vmatpush.msra.mxu0 0.0
      %863 = vmatpush.msra.mxu0 0.0
      %864 = vmatpush.msra.mxu0 0.0
      %865 = vmatpush.msra.mxu0 0.0
      %866 = vmatpush.msra.mxu0 0.0
      %867 = vmatpush.msra.mxu0 %v814
      %868 = vmatpush.msra.mxu0 %v804
      %869 = vmatpush.msra.mxu0 %v794
      %870 = vmatpush.msra.mxu0 %v784
      %871 = vmatpush.msra.mxu0 %v774
      %872 = vmatpush.msra.mxu0 %v764
      %873 = vmatpush.msra.mxu0 %v754
      %874 = vmatpush.msra.mxu0 %v744
      %875 = vmatpush.msra.mxu0 %v732
      %876 = vmatmul.f32.gmra.mxu0 %v818
      %v877 = vpop.f32.mrf.mxu0
      %v878 = vadd.f32 0.0, %v877
      %879 = vdwg.mxu0
      %881 = vset.pattern.permute.xlu0 0
      %882 = vperm.xlu0 %881, %v724
      %v883 = vpop.permute.xlu0 %882
      %v885 = vmul.f32 %v838, %v883
      %v886 = vmul.f32 %v858, %v883
      %v887 = vmul.f32 %v878, %v883
      %888 = vrot.lane.b32.xlu0 %v885, 20
      %v889 = vpop.permute.xlu0 %888
      %890 = vrot.lane.b32.xlu0 %v886, 20
      %v891 = vpop.permute.xlu0 %890
      %892 = vrot.lane.b32.xlu0 %v887, 20
      %v893 = vpop.permute.xlu0 %892
      %vm894 = vcmp.lt.s32.totalorder %v740, 20
      %v895 = vsel %vm894, %v891, %v893
      %v896 = vsel %vm894, %v889, %v891
      %v897 = vsel %vm894, %v893, %v889
      %v899 = vperm.slane %v632, 0
      %v900 = vperm.slane %v632, 1
      %v901 = vperm.slane %v632, 2
      %v905 = vmul.f32 %v897, %v899
      %v906 = vmul.f32 %v896, %v900
      %v907 = vmul.f32 %v895, %v901
      %v908 = vmul.f32 %v905, 0.25
      %v909 = vmul.f32 %v906, 0.25
      %v910 = vmul.f32 %v907, 0.25
      %911 = vrot.lane.b32.xlu0 %v905, 127
      %v912 = vpop.permute.xlu0 %911
      %913 = vrot.lane.b32.xlu0 %v906, 127
      %v914 = vpop.permute.xlu0 %913
      %915 = vrot.lane.b32.xlu0 %v907, 127
      %v916 = vpop.permute.xlu0 %915
      %v917 = vsel %vm741, %v914, %v916
      %v918 = vsel %vm741, %v912, %v914
      %v919 = vsel %vm741, %v916, %v912
      %v920 = vmul.f32 %v918, 0.75
      %v921 = vmul.f32 %v917, 0.75
      %v922 = vmul.f32 %v919, 0.75
      %v923 = vadd.f32 %v908, %v920
      %v924 = vadd.f32 %v909, %v921
      %v925 = vadd.f32 %v910, %v922
      %926 = vrot.lane.b32.xlu0 %v905, 126
      %v927 = vpop.permute.xlu0 %926
      %928 = vrot.lane.b32.xlu0 %v906, 126
      %v929 = vpop.permute.xlu0 %928
      %930 = vrot.lane.b32.xlu0 %v907, 126
      %v931 = vpop.permute.xlu0 %930
      %v932 = vsel %vm751, %v929, %v931
      %v933 = vsel %vm751, %v927, %v929
      %v934 = vsel %vm751, %v931, %v927
      %v935 = vmul.f32 %v933, 0.75
      %v936 = vmul.f32 %v932, 0.75
      %v937 = vmul.f32 %v934, 0.75
      %v938 = vadd.f32 %v923, %v935
      %v939 = vadd.f32 %v924, %v936
      %v940 = vadd.f32 %v925, %v937
      %941 = vrot.lane.b32.xlu0 %v905, 125
      %v942 = vpop.permute.xlu0 %941
      %943 = vrot.lane.b32.xlu0 %v906, 125
      %v944 = vpop.permute.xlu0 %943
      %945 = vrot.lane.b32.xlu0 %v907, 125
      %v946 = vpop.permute.xlu0 %945
      %vm947 = vcmp.lt.s32.totalorder %v740, 125
      %v948 = vsel %vm947, %v944, %v946
      %v949 = vsel %vm947, %v942, %v944
      %v950 = vsel %vm947, %v946, %v942
      %v951 = vmul.f32 %v949, 0.25
      %v952 = vmul.f32 %v948, 0.25
      %v953 = vmul.f32 %v950, 0.25
      %v954 = vadd.f32 %v938, %v951
      %v955 = vadd.f32 %v939, %v952
      %v956 = vadd.f32 %v940, %v953
      %v957 = vmul.f32 %v954, 0.25
      %v958 = vmul.f32 %v955, 0.25
      %v959 = vmul.f32 %v956, 0.25
      %960 = vrot.lane.b32.xlu0 %v954, 109
      %v961 = vpop.permute.xlu0 %960
      %962 = vrot.lane.b32.xlu0 %v955, 109
      %v963 = vpop.permute.xlu0 %962
      %964 = vrot.lane.b32.xlu0 %v956, 109
      %v965 = vpop.permute.xlu0 %964
      %v966 = vsel %vm761, %v963, %v965
      %v967 = vsel %vm761, %v961, %v963
      %v968 = vsel %vm761, %v965, %v961
      %v969 = vmul.f32 %v967, 0.75
      %v970 = vmul.f32 %v966, 0.75
      %v971 = vmul.f32 %v968, 0.75
      %v972 = vadd.f32 %v957, %v969
      %v973 = vadd.f32 %v958, %v970
      %v974 = vadd.f32 %v959, %v971
      %975 = vrot.lane.b32.xlu0 %v954, 90
      %v976 = vpop.permute.xlu0 %975
      %977 = vrot.lane.b32.xlu0 %v955, 90
      %v978 = vpop.permute.xlu0 %977
      %979 = vrot.lane.b32.xlu0 %v956, 90
      %v980 = vpop.permute.xlu0 %979
      %v981 = vsel %vm791, %v978, %v980
      %v982 = vsel %vm791, %v976, %v978
      %v983 = vsel %vm791, %v980, %v976
      %v984 = vmul.f32 %v982, 0.75
      %v985 = vmul.f32 %v981, 0.75
      %v986 = vmul.f32 %v983, 0.75
      %v987 = vadd.f32 %v972, %v984
      %v988 = vadd.f32 %v973, %v985
      %v989 = vadd.f32 %v974, %v986
      %990 = vrot.lane.b32.xlu0 %v954, 71
      %v991 = vpop.permute.xlu0 %990
      %992 = vrot.lane.b32.xlu0 %v955, 71
      %v993 = vpop.permute.xlu0 %992
      %994 = vrot.lane.b32.xlu0 %v956, 71
      %v995 = vpop.permute.xlu0 %994
      %vm996 = vcmp.lt.s32.totalorder %v740, 71
      %v997 = vsel %vm996, %v993, %v995
      %v998 = vsel %vm996, %v991, %v993
      %v999 = vsel %vm996, %v995, %v991
      %v1000 = vmul.f32 %v998, 0.25
      %v1001 = vmul.f32 %v997, 0.25
      %v1002 = vmul.f32 %v999, 0.25
      %v1003 = vadd.f32 %v987, %v1000
      %v1004 = vadd.f32 %v988, %v1001
      %v1005 = vadd.f32 %v989, %v1002
      %v1006 = vld [vmem:[%s10] sm:$0xff]
      %1008 = vset.pattern.permute.xlu0 0
      %1009 = vperm.xlu0 %1008, %v1006
      %v1010 = vpop.permute.xlu0 %1009
      %v1012 = vadd.f32 %v1003, %v1010
      %v1013 = vadd.f32 %v1004, %v1010
      %v1014 = vadd.f32 %v1005, %v1010
      %v1015 = vmul.f32 %v1012, 0.2
      %v1016 = vmul.f32 %v1013, 0.2
      %v1017 = vmul.f32 %v1014, 0.2
      %v1018 = vmax.f32 %v1012, %v1015
      %v1019 = vmax.f32 %v1013, %v1016
      %v1020 = vmax.f32 %v1014, %v1017
      %v1021 = vmul.f32 %v1018, 1.4142135
      %v1022 = vmul.f32 %v1019, 1.4142135
      %v1023 = vmul.f32 %v1020, 1.4142135
      %v1024 = vadd.f32 %v1021, %v627
      %v1025 = vadd.f32 %v1022, %v628
      %v1026 = vadd.f32 %v1023, %v629
      %v1027 = vld [vmem:[%s12] sm:$0xff]
      %v1028 = vmul.f32 %v687, %v687
      %v1030 = vsel %vm691, %v1027, 0
      %1032 = vmatpush.msra.mxu0 0.0
      %1033 = vmatpush.msra.mxu0 0.0
      %1034 = vmatpush.msra.mxu0 0.0
      %1035 = vmatpush.msra.mxu0 0.0
      %1036 = vmatpush.msra.mxu0 0.0
      %1037 = vmatpush.msra.mxu0 0.0
      %1038 = vmatpush.msra.mxu0 0.0
      %1039 = vmatpush.msra.mxu0 0.0
      %1040 = vmatpush.msra.mxu0 0.0
      %1041 = vmatpush.msra.mxu0 0.0
      %1042 = vmatpush.msra.mxu0 0.0
      %1043 = vmatpush.msra.mxu0 0.0
      %1044 = vmatpush.msra.mxu0 0.0
      %1045 = vmatpush.msra.mxu0 0.0
      %1046 = vmatpush.msra.mxu0 0.0
      %1047 = vmatpush.msra.mxu0 %v1028
      %1048 = vmatmul.f32.gmra.mxu0 %v1030
      %v1049 = vpop.f32.mrf.mxu0
      %v1050 = vadd.f32 1e-08, %v1049
      %1051 = vdwg.mxu0
      %v1052 = vrsqrt.pop %v1050
      %v1053 = vmul.f32 %v1052, %v1050
      %v1054 = vmul.f32 %v1053, %v1052
      %v1055 = vmul.f32 0.5, %v1054
      %v1056 = vsub.f32 1.5, %v1055
      %v1057 = vmul.f32 %v1052, %v1056
      %vm1058 = vweird.f32 %v1050
      %vm1059 = vweird.f32 %v1052
      %vm1060 = vmor %vm1058, %vm1059
      %v1061 = vsel %vm1060, %v1052, %v1057
      %1062 = vrot.lane.b32.xlu0 %v1024, 20
      %v1063 = vpop.permute.xlu0 %1062
      %1064 = vrot.lane.b32.xlu0 %v1025, 20
      %v1065 = vpop.permute.xlu0 %1064
      %1066 = vrot.lane.b32.xlu0 %v1026, 20
      %v1067 = vpop.permute.xlu0 %1066
      %v1068 = vsel %vm894, %v1065, %v1067
      %v1069 = vsel %vm894, %v1063, %v1065
      %v1070 = vsel %vm894, %v1067, %v1063
      %v1072 = vperm.slane %v634, 0
      %v1073 = vperm.slane %v634, 1
      %v1074 = vperm.slane %v634, 2
      %v1078 = vmul.f32 %v1070, %v1072
      %v1079 = vmul.f32 %v1069, %v1073
      %v1080 = vmul.f32 %v1068, %v1074
      %1082 = vset.pattern.permute.xlu0 0
      %1083 = vperm.xlu0 %1082, %v687
      %v1084 = vpop.permute.xlu0 %1083
      %v1086 = vmul.f32 %v1078, %v1084
      %v1087 = vmul.f32 %v1079, %v1084
      %v1088 = vmul.f32 %v1080, %v1084
      %1089 = vrot.lane.b32.xlu0 %v1086, 127
      %v1090 = vpop.permute.xlu0 %1089
      %1091 = vrot.lane.b32.xlu0 %v1087, 127
      %v1092 = vpop.permute.xlu0 %1091
      %1093 = vrot.lane.b32.xlu0 %v1088, 127
      %v1094 = vpop.permute.xlu0 %1093
      %v1095 = vsel %vm741, %v1092, %v1094
      %v1096 = vsel %vm741, %v1090, %v1092
      %v1097 = vsel %vm741, %v1094, %v1090
      %1098 = vrot.lane.b32.xlu0 %v1086, 126
      %v1099 = vpop.permute.xlu0 %1098
      %1100 = vrot.lane.b32.xlu0 %v1087, 126
      %v1101 = vpop.permute.xlu0 %1100
      %1102 = vrot.lane.b32.xlu0 %v1088, 126
      %v1103 = vpop.permute.xlu0 %1102
      %v1104 = vsel %vm751, %v1101, %v1103
      %v1105 = vsel %vm751, %v1099, %v1101
      %v1106 = vsel %vm751, %v1103, %v1099
      %1107 = vrot.lane.b32.xlu0 %v1086, 109
      %v1108 = vpop.permute.xlu0 %1107
      %1109 = vrot.lane.b32.xlu0 %v1087, 109
      %v1110 = vpop.permute.xlu0 %1109
      %1111 = vrot.lane.b32.xlu0 %v1088, 109
      %v1112 = vpop.permute.xlu0 %1111
      %v1113 = vsel %vm761, %v1110, %v1112
      %v1114 = vsel %vm761, %v1108, %v1110
      %v1115 = vsel %vm761, %v1112, %v1108
      %1116 = vrot.lane.b32.xlu0 %v1086, 108
      %v1117 = vpop.permute.xlu0 %1116
      %1118 = vrot.lane.b32.xlu0 %v1087, 108
      %v1119 = vpop.permute.xlu0 %1118
      %1120 = vrot.lane.b32.xlu0 %v1088, 108
      %v1121 = vpop.permute.xlu0 %1120
      %v1122 = vsel %vm771, %v1119, %v1121
      %v1123 = vsel %vm771, %v1117, %v1119
      %v1124 = vsel %vm771, %v1121, %v1117
      %1125 = vrot.lane.b32.xlu0 %v1086, 107
      %v1126 = vpop.permute.xlu0 %1125
      %1127 = vrot.lane.b32.xlu0 %v1087, 107
      %v1128 = vpop.permute.xlu0 %1127
      %1129 = vrot.lane.b32.xlu0 %v1088, 107
      %v1130 = vpop.permute.xlu0 %1129
      %v1131 = vsel %vm781, %v1128, %v1130
      %v1132 = vsel %vm781, %v1126, %v1128
      %v1133 = vsel %vm781, %v1130, %v1126
      %1134 = vrot.lane.b32.xlu0 %v1086, 90
      %v1135 = vpop.permute.xlu0 %1134
      %1136 = vrot.lane.b32.xlu0 %v1087, 90
      %v1137 = vpop.permute.xlu0 %1136
      %1138 = vrot.lane.b32.xlu0 %v1088, 90
      %v1139 = vpop.permute.xlu0 %1138
      %v1140 = vsel %vm791, %v1137, %v1139
      %v1141 = vsel %vm791, %v1135, %v1137
      %v1142 = vsel %vm791, %v1139, %v1135
      %1143 = vrot.lane.b32.xlu0 %v1086, 89
      %v1144 = vpop.permute.xlu0 %1143
      %1145 = vrot.lane.b32.xlu0 %v1087, 89
      %v1146 = vpop.permute.xlu0 %1145
      %1147 = vrot.lane.b32.xlu0 %v1088, 89
      %v1148 = vpop.permute.xlu0 %1147
      %v1149 = vsel %vm801, %v1146, %v1148
      %v1150 = vsel %vm801, %v1144, %v1146
      %v1151 = vsel %vm801, %v1148, %v1144
      %1152 = vrot.lane.b32.xlu0 %v1086, 88
      %v1153 = vpop.permute.xlu0 %1152
      %1154 = vrot.lane.b32.xlu0 %v1087, 88
      %v1155 = vpop.permute.xlu0 %1154
      %1156 = vrot.lane.b32.xlu0 %v1088, 88
      %v1157 = vpop.permute.xlu0 %1156
      %v1158 = vsel %vm811, %v1155, %v1157
      %v1159 = vsel %vm811, %v1153, %v1155
      %v1160 = vsel %vm811, %v1157, %v1153
      %v1161 = vld [vmem:[%s11] sm:$0xff]
      %v1163 = vsel %vm816, %v1161, 0
      %1165 = vmatpush.msra.mxu0 0.0
      %1166 = vmatpush.msra.mxu0 0.0
      %1167 = vmatpush.msra.mxu0 0.0
      %1168 = vmatpush.msra.mxu0 0.0
      %1169 = vmatpush.msra.mxu0 0.0
      %1170 = vmatpush.msra.mxu0 0.0
      %1171 = vmatpush.msra.mxu0 0.0
      %1172 = vmatpush.msra.mxu0 %v1159
      %1173 = vmatpush.msra.mxu0 %v1150
      %1174 = vmatpush.msra.mxu0 %v1141
      %1175 = vmatpush.msra.mxu0 %v1132
      %1176 = vmatpush.msra.mxu0 %v1123
      %1177 = vmatpush.msra.mxu0 %v1114
      %1178 = vmatpush.msra.mxu0 %v1105
      %1179 = vmatpush.msra.mxu0 %v1096
      %1180 = vmatpush.msra.mxu0 %v1086
      %1181 = vmatmul.f32.gmra.mxu0 %v1163
      %v1182 = vpop.f32.mrf.mxu0
      %v1183 = vadd.f32 0.0, %v1182
      %1184 = vdwg.mxu0
      %1185 = vmatpush.msra.mxu0 0.0
      %1186 = vmatpush.msra.mxu0 0.0
      %1187 = vmatpush.msra.mxu0 0.0
      %1188 = vmatpush.msra.mxu0 0.0
      %1189 = vmatpush.msra.mxu0 0.0
      %1190 = vmatpush.msra.mxu0 0.0
      %1191 = vmatpush.msra.mxu0 0.0
      %1192 = vmatpush.msra.mxu0 %v1158
      %1193 = vmatpush.msra.mxu0 %v1149
      %1194 = vmatpush.msra.mxu0 %v1140
      %1195 = vmatpush.msra.mxu0 %v1131
      %1196 = vmatpush.msra.mxu0 %v1122
      %1197 = vmatpush.msra.mxu0 %v1113
      %1198 = vmatpush.msra.mxu0 %v1104
      %1199 = vmatpush.msra.mxu0 %v1095
      %1200 = vmatpush.msra.mxu0 %v1087
      %1201 = vmatmul.f32.gmra.mxu0 %v1163
      %v1202 = vpop.f32.mrf.mxu0
      %v1203 = vadd.f32 0.0, %v1202
      %1204 = vdwg.mxu0
      %1205 = vmatpush.msra.mxu0 0.0
      %1206 = vmatpush.msra.mxu0 0.0
      %1207 = vmatpush.msra.mxu0 0.0
      %1208 = vmatpush.msra.mxu0 0.0
      %1209 = vmatpush.msra.mxu0 0.0
      %1210 = vmatpush.msra.mxu0 0.0
      %1211 = vmatpush.msra.mxu0 0.0
      %1212 = vmatpush.msra.mxu0 %v1160
      %1213 = vmatpush.msra.mxu0 %v1151
      %1214 = vmatpush.msra.mxu0 %v1142
      %1215 = vmatpush.msra.mxu0 %v1133
      %1216 = vmatpush.msra.mxu0 %v1124
      %1217 = vmatpush.msra.mxu0 %v1115
      %1218 = vmatpush.msra.mxu0 %v1106
      %1219 = vmatpush.msra.mxu0 %v1097
      %1220 = vmatpush.msra.mxu0 %v1088
      %1221 = vmatmul.f32.gmra.mxu0 %v1163
      %v1222 = vpop.f32.mrf.mxu0
      %v1223 = vadd.f32 0.0, %v1222
      %1224 = vdwg.mxu0
      %1226 = vset.pattern.permute.xlu0 0
      %1227 = vperm.xlu0 %1226, %v1061
      %v1228 = vpop.permute.xlu0 %1227
      %v1230 = vmul.f32 %v1183, %v1228
      %v1231 = vmul.f32 %v1203, %v1228
      %v1232 = vmul.f32 %v1223, %v1228
      %v1233 = vld [vmem:[%s13] sm:$0xff]
      %1235 = vset.pattern.permute.xlu0 0
      %1236 = vperm.xlu0 %1235, %v1233
      %v1237 = vpop.permute.xlu0 %1236
      %v1239 = vadd.f32 %v1230, %v1237
      %v1240 = vadd.f32 %v1231, %v1237
      %v1241 = vadd.f32 %v1232, %v1237
      %v1242 = vmul.f32 %v1239, 0.2
      %v1243 = vmul.f32 %v1240, 0.2
      %v1244 = vmul.f32 %v1241, 0.2
      %v1245 = vmax.f32 %v1239, %v1242
      %v1246 = vmax.f32 %v1240, %v1243
      %v1247 = vmax.f32 %v1241, %v1244
      %v1248 = vmul.f32 %v1245, 1.4142135
      %v1249 = vmul.f32 %v1246, 1.4142135
      %v1250 = vmul.f32 %v1247, 1.4142135
      %1251 = vst [vmem:[%s616] sm:$0xff] %v1248
      %1252 = vst [vmem:[%s616 + $0x8] sm:$0xff] %v1249
      %1253 = vst [vmem:[%s616 + $0x10] sm:$0xff] %v1250
      %v1254 = vld [vmem:[%s14] sm:$0x7]
      %1256 = vset.pattern.permute.xlu0 0
      %1257 = vperm.xlu0 %1256, %v688
      %v1258 = vpop.permute.xlu0 %1257
      %v1260 = vmul.f32 %v1248, %v1258
      %v1261 = vmul.f32 %v1249, %v1258
      %v1262 = vmul.f32 %v1250, %v1258
      %v1263 = vld [vmem:[%s15] sm:$0x7]
      %1265 = vset.pattern.permute.xlu0 0
      %1266 = vperm.xlu0 %1265, %v1263
      %v1267 = vpop.permute.xlu0 %1266
      %v1270 = vsel %vm691, %v1254, 0
      %1272 = vmatpush.msra.mxu0 0.0
      %1273 = vmatpush.msra.mxu0 0.0
      %1274 = vmatpush.msra.mxu0 0.0
      %1275 = vmatpush.msra.mxu0 0.0
      %1276 = vmatpush.msra.mxu0 0.0
      %1277 = vmatpush.msra.mxu0 0.0
      %1278 = vmatpush.msra.mxu0 0.0
      %1279 = vmatpush.msra.mxu0 0.0
      %1280 = vmatpush.msra.mxu0 0.0
      %1281 = vmatpush.msra.mxu0 0.0
      %1282 = vmatpush.msra.mxu0 0.0
      %1283 = vmatpush.msra.mxu0 0.0
      %1284 = vmatpush.msra.mxu0 0.0
      %1285 = vmatpush.msra.mxu0 0.0
      %1286 = vmatpush.msra.mxu0 0.0
      %1287 = vmatpush.msra.mxu0 %v1260
      %1288 = vmatmul.f32.gmra.mxu0 %v1270
      %v1289 = vpop.f32.mrf.mxu0
      %v1290 = vadd.f32 %v1267, %v1289
      %1291 = vdwg.mxu0
      %1292 = vmatpush.msra.mxu0 0.0
      %1293 = vmatpush.msra.mxu0 0.0
      %1294 = vmatpush.msra.mxu0 0.0
      %1295 = vmatpush.msra.mxu0 0.0
      %1296 = vmatpush.msra.mxu0 0.0
      %1297 = vmatpush.msra.mxu0 0.0
      %1298 = vmatpush.msra.mxu0 0.0
      %1299 = vmatpush.msra.mxu0 0.0
      %1300 = vmatpush.msra.mxu0 0.0
      %1301 = vmatpush.msra.mxu0 0.0
      %1302 = vmatpush.msra.mxu0 0.0
      %1303 = vmatpush.msra.mxu0 0.0
      %1304 = vmatpush.msra.mxu0 0.0
      %1305 = vmatpush.msra.mxu0 0.0
      %1306 = vmatpush.msra.mxu0 0.0
      %1307 = vmatpush.msra.mxu0 %v1261
      %1308 = vmatmul.f32.gmra.mxu0 %v1270
      %v1309 = vpop.f32.mrf.mxu0
      %v1310 = vadd.f32 %v1267, %v1309
      %1311 = vdwg.mxu0
      %1312 = vmatpush.msra.mxu0 0.0
      %1313 = vmatpush.msra.mxu0 0.0
      %1314 = vmatpush.msra.mxu0 0.0
      %1315 = vmatpush.msra.mxu0 0.0
      %1316 = vmatpush.msra.mxu0 0.0
      %1317 = vmatpush.msra.mxu0 0.0
      %1318 = vmatpush.msra.mxu0 0.0
      %1319 = vmatpush.msra.mxu0 0.0
      %1320 = vmatpush.msra.mxu0 0.0
      %1321 = vmatpush.msra.mxu0 0.0
      %1322 = vmatpush.msra.mxu0 0.0
      %1323 = vmatpush.msra.mxu0 0.0
      %1324 = vmatpush.msra.mxu0 0.0
      %1325 = vmatpush.msra.mxu0 0.0
      %1326 = vmatpush.msra.mxu0 0.0
      %1327 = vmatpush.msra.mxu0 %v1262
      %1328 = vmatmul.f32.gmra.mxu0 %v1270
      %v1329 = vpop.f32.mrf.mxu0
      %v1330 = vadd.f32 %v1267, %v1329
      %1331 = vdwg.mxu0
      %v1332 = vmul.f32 %v630, 0.25
      %v1333 = vmul.f32 %v631, 0.25
      %1336 = vst [vmem:[#allocation1] ss:$2 sm:$0xff] %v630
      %s1337 = scalar_lea.vmem [#allocation1], 16
      %1338 = vst [vmem:[%s1337] ss:$2 sm:$0xff] %v631
      %v1339 = vld.sshfl [vmem:[#allocation1] sm:$0xff pattern:$0x75316420]
      %v1340 = vld.sshfl [vmem:[#allocation1 + $0x8] sm:$0xff pattern:$0x75316420]
      %v1341 = vld.sshfl [vmem:[#allocation1 + $0x10] sm:$0xff pattern:$0x75316420]
      %1345 = vrot.lane.b32.xlu0 %v1339, 127
      %v1346 = vpop.permute.xlu0 %1345
      %1347 = vrot.lane.b32.xlu0 %v1340, 127
      %v1348 = vpop.permute.xlu0 %1347
      %1349 = vrot.lane.b32.xlu0 %v1341, 127
      %v1350 = vpop.permute.xlu0 %1349
      %v1351 = vsel %vm741, %v1348, %v1350
      %v1352 = vsel %vm741, %v1346, %v1348
      %v1353 = vsel %vm741, %v1350, %v1346
      %v1354 = vmul.f32 %v1352, 0.75
      %v1355 = vmul.f32 %v1351, 0.75
      %v1356 = vmul.f32 %v1353, 0.75
      %v1359 = vrot.slane %v1355, 4
      %vm1360 = vcmask 1043456
      %v1361 = vsel %vm1360, %v1354, %v1359
      %v1363 = vadd.f32 %v1332, %v1361
      %v1364 = vadd.f32 %v1333, %v1356
      %1365 = vst [vmem:[#allocation1] ss:$2 sm:$0xff] %v630
      %s1366 = scalar_lea.vmem [#allocation1], 16
      %1367 = vst [vmem:[%s1366] ss:$2 sm:$0xff] %v631
      %v1368 = vld.sshfl [vmem:[#allocation1] sm:$0xff pattern:$0x75316420]
      %v1369 = vld.sshfl [vmem:[#allocation1 + $0x8] sm:$0xff pattern:$0x75316420]
      %v1370 = vld.sshfl [vmem:[#allocation1 + $0x10] sm:$0xff pattern:$0x75316420]
      %1374 = vrot.lane.b32.xlu0 %v1368, 126
      %v1375 = vpop.permute.xlu0 %1374
      %1376 = vrot.lane.b32.xlu0 %v1369, 126
      %v1377 = vpop.permute.xlu0 %1376
      %1378 = vrot.lane.b32.xlu0 %v1370, 126
      %v1379 = vpop.permute.xlu0 %1378
      %v1380 = vsel %vm751, %v1377, %v1379
      %v1381 = vsel %vm751, %v1375, %v1377
      %v1382 = vsel %vm751, %v1379, %v1375
      %v1383 = vmul.f32 %v1381, 0.75
      %v1384 = vmul.f32 %v1380, 0.75
      %v1385 = vmul.f32 %v1382, 0.75
      %v1388 = vrot.slane %v1384, 4
      %v1389 = vsel %vm1360, %v1383, %v1388
      %v1391 = vadd.f32 %v1363, %v1389
      %v1392 = vadd.f32 %v1364, %v1385
      %1393 = vst [vmem:[#allocation1] ss:$2 sm:$0xff] %v630
      %s1394 = scalar_lea.vmem [#allocation1], 16
      %1395 = vst [vmem:[%s1394] ss:$2 sm:$0xff] %v631
      %v1396 = vld.sshfl [vmem:[#allocation1] sm:$0xff pattern:$0x75316420]
      %v1397 = vld.sshfl [vmem:[#allocation1 + $0x8] sm:$0xff pattern:$0x75316420]
      %v1398 = vld.sshfl [vmem:[#allocation1 + $0x10] sm:$0xff pattern:$0x75316420]
      %1402 = vrot.lane.b32.xlu0 %v1396, 125
      %v1403 = vpop.permute.xlu0 %1402
      %1404 = vrot.lane.b32.xlu0 %v1397, 125
      %v1405 = vpop.permute.xlu0 %1404
      %1406 = vrot.lane.b32.xlu0 %v1398, 125
      %v1407 = vpop.permute.xlu0 %1406
      %v1408 = vsel %vm947, %v1405, %v1407
      %v1409 = vsel %vm947, %v1403, %v1405
      %v1410 = vsel %vm947, %v1407, %v1403
      %v1411 = vmul.f32 %v1409, 0.25
      %v1412 = vmul.f32 %v1408, 0.25
      %v1413 = vmul.f32 %v1410, 0.25
      %v1416 = vrot.slane %v1412, 4
      %v1417 = vsel %vm1360, %v1411, %v1416
      %v1419 = vadd.f32 %v1391, %v1417
      %v1420 = vadd.f32 %v1392, %v1413
      %v1421 = vmul.f32 %v1419, 0.25
      %v1422 = vmul.f32 %v1420, 0.25
      %1425 = vst [vmem:[#allocation1] ss:$2 sm:$0xff] %v1419
      %s1426 = scalar_lea.vmem [#allocation1], 16
      %1427 = vst [vmem:[%s1426] ss:$2 sm:$0xff] %v1420
      %v1428 = vld.sshfl [vmem:[#allocation1] sm:$0xff pattern:$0x75316420]
      %v1429 = vld.sshfl [vmem:[#allocation1 + $0x8] sm:$0xff pattern:$0x75316420]
      %v1430 = vld.sshfl [vmem:[#allocation1 + $0x10] sm:$0xff pattern:$0x75316420]
      %1434 = vrot.lane.b32.xlu0 %v1428, 109
      %v1435 = vpop.permute.xlu0 %1434
      %1436 = vrot.lane.b32.xlu0 %v1429, 109
      %v1437 = vpop.permute.xlu0 %1436
      %1438 = vrot.lane.b32.xlu0 %v1430, 109
      %v1439 = vpop.permute.xlu0 %1438
      %v1440 = vsel %vm761, %v1437, %v1439
      %v1441 = vsel %vm761, %v1435, %v1437
      %v1442 = vsel %vm761, %v1439, %v1435
      %v1443 = vmul.f32 %v1441, 0.75
      %v1444 = vmul.f32 %v1440, 0.75
      %v1445 = vmul.f32 %v1442, 0.75
      %v1448 = vrot.slane %v1444, 4
      %v1449 = vsel %vm1360, %v1443, %v1448
      %v1451 = vadd.f32 %v1421, %v1449
      %v1452 = vadd.f32 %v1422, %v1445
      %1453 = vst [vmem:[#allocation1] ss:$2 sm:$0xff] %v1419
      %s1454 = scalar_lea.vmem [#allocation1], 16
      %1455 = vst [vmem:[%s1454] ss:$2 sm:$0xff] %v1420
      %v1456 = vld.sshfl [vmem:[#allocation1] sm:$0xff pattern:$0x75316420]
      %v1457 = vld.sshfl [vmem:[#allocation1 + $0x8] sm:$0xff pattern:$0x75316420]
      %v1458 = vld.sshfl [vmem:[#allocation1 + $0x10] sm:$0xff pattern:$0x75316420]
      %1462 = vrot.lane.b32.xlu0 %v1456, 90
      %v1463 = vpop.permute.xlu0 %1462
      %1464 = vrot.lane.b32.xlu0 %v1457, 90
      %v1465 = vpop.permute.xlu0 %1464
      %1466 = vrot.lane.b32.xlu0 %v1458, 90
      %v1467 = vpop.permute.xlu0 %1466
      %v1468 = vsel %vm791, %v1465, %v1467
      %v1469 = vsel %vm791, %v1463, %v1465
      %v1470 = vsel %vm791, %v1467, %v1463
      %v1471 = vmul.f32 %v1469, 0.75
      %v1472 = vmul.f32 %v1468, 0.75
      %v1473 = vmul.f32 %v1470, 0.75
      %v1476 = vrot.slane %v1472, 4
      %v1477 = vsel %vm1360, %v1471, %v1476
      %v1479 = vadd.f32 %v1451, %v1477
      %v1480 = vadd.f32 %v1452, %v1473
      %1481 = vst [vmem:[#allocation1] ss:$2 sm:$0xff] %v1419
      %s1482 = scalar_lea.vmem [#allocation1], 16
      %1483 = vst [vmem:[%s1482] ss:$2 sm:$0xff] %v1420
      %v1484 = vld.sshfl [vmem:[#allocation1] sm:$0xff pattern:$0x75316420]
      %v1485 = vld.sshfl [vmem:[#allocation1 + $0x8] sm:$0xff pattern:$0x75316420]
      %v1486 = vld.sshfl [vmem:[#allocation1 + $0x10] sm:$0xff pattern:$0x75316420]
      %1490 = vrot.lane.b32.xlu0 %v1484, 71
      %v1491 = vpop.permute.xlu0 %1490
      %1492 = vrot.lane.b32.xlu0 %v1485, 71
      %v1493 = vpop.permute.xlu0 %1492
      %1494 = vrot.lane.b32.xlu0 %v1486, 71
      %v1495 = vpop.permute.xlu0 %1494
      %v1496 = vsel %vm996, %v1493, %v1495
      %v1497 = vsel %vm996, %v1491, %v1493
      %v1498 = vsel %vm996, %v1495, %v1491
      %v1499 = vmul.f32 %v1497, 0.25
      %v1500 = vmul.f32 %v1496, 0.25
      %v1501 = vmul.f32 %v1498, 0.25
      %v1504 = vrot.slane %v1500, 4
      %v1505 = vsel %vm1360, %v1499, %v1504
      %v1507 = vadd.f32 %v1479, %v1505
      %v1508 = vadd.f32 %v1480, %v1501
      %v1511 = vrot.slane %v1310, 4
      %v1512 = vsel %vm1360, %v1290, %v1511
      %v1514 = vadd.f32 %v1507, %v1512
      %v1515 = vadd.f32 %v1508, %v1330
      %1516 = vst [vmem:[%s621] sm:$0x77] %v1514
      %1517 = vst [vmem:[%s621 + $0x8] sm:$0x7] %v1515
      %p1518 = scmp.lt.s32.totalorder %s29, 1
      %s1519 = scalar_select %p1518, %s29, 1
      %s1520 = smul.addr %s1519, 3
      %s1521 = smul.addr %s1520, 8
      %s1522 = scalar_lea.vmem %s16, %s1521
      %p1523 = scmp.lt.s32.totalorder %s29, 1
      %s1524 = scalar_select %p1523, %s29, 1
      %s1525 = smul.addr %s1524, 3
      %s1526 = smul.addr %s1525, 4
      %s1527 = scalar_lea.vmem %s17, %s1526
      // Predicated region
      $region85: #{dec_style_block_forward.1} parent=83 // pred_check
        %p1528 = pneg %p403
      $region86: #{dec_style_block_forward.1} parent=83 // pred_check_branch
        %1530 = sbr.rel (%p1528) target = $region88
      $region87: #{dec_style_block_forward.1} parent=83 // pred_region
        _
      $region88: #{dec_style_block_forward.1} parent=83 // pred_fallthru
        _
      // Predicated region
      $region89: #{dec_style_block_forward.1} parent=83 // pred_check
        %p1531 = pneg %p429
      $region90: #{dec_style_block_forward.1} parent=83 // pred_check_branch
        %1533 = sbr.rel (%p1531) target = $region92
      $region91: #{dec_style_block_forward.1} parent=83 // pred_region
        _
      $region92: #{dec_style_block_forward.1} parent=83 // pred_fallthru
        _
    $region84: #{dec_style_block_forward.1} parent=5 // pred_fallthru
      _
    %p1534 = scmp.le.s32.totalorder 2, %s24
    // Predicated region
    $region93: #{dec_style_block_forward.1} parent=5 // pred_check
      %p1535 = pneg %p1534
    $region94: #{dec_style_block_forward.1} parent=5 // pred_check_branch
      %1537 = sbr.rel (%p1535) target = $region96
    $region95: #{dec_style_block_forward.1} parent=5 // pred_region
      %s1538 = ssub.s32 %s24, 2
      // Predicated region
      $region97: #{dec_style_block_forward.1} parent=95 // pred_check
        %p1539 = pneg %p409
      $region98: #{dec_style_block_forward.1} parent=95 // pred_check_branch
        %1541 = sbr.rel (%p1539) target = $region100
      $region99: #{dec_style_block_forward.1} parent=95 // pred_region
        %p1542 = scmp.lt.s32.totalorder %s30, 1
        %s1543 = scalar_select %p1542, %s30, 1
        %s1544 = smul.addr %s1543, 3
        %s1545 = smul.addr %s1544, 8
        %s1546 = scalar_lea.vmem %s16, %s1545
      $region100: #{dec_style_block_forward.1} parent=95 // pred_fallthru
        _
      // Predicated region
      $region101: #{dec_style_block_forward.1} parent=95 // pred_check
        %p1547 = pneg %p435
      $region102: #{dec_style_block_forward.1} parent=95 // pred_check_branch
        %1549 = sbr.rel (%p1547) target = $region104
      $region103: #{dec_style_block_forward.1} parent=95 // pred_region
        %p1550 = scmp.lt.s32.totalorder %s30, 1
        %s1551 = scalar_select %p1550, %s30, 1
        %s1552 = smul.addr %s1551, 3
        %s1553 = smul.addr %s1552, 4
        %s1554 = scalar_lea.vmem %s17, %s1553
      $region104: #{dec_style_block_forward.1} parent=95 // pred_fallthru
        _
    $region96: #{dec_style_block_forward.1} parent=5 // pred_fallthru
      _
  $region6: #{dec_style_block_forward.1} parent=0 // loop_footer
    %s28 = sadd.s32 1, %s24
  $region7: #{dec_style_block_forward.1} parent=0 // loop_footer_branch
    %23 = sbr.rel target = $region3
  $region8: #{dec_style_block_forward.1} parent=0 // loop_exit
    _

</llo_original>
